<compile_context>
chip_gen: v7x
topology: tpu7x:2x2x1
jax: 0.10.0
libtpu: 0.0.40
codegen_flags: <defaults>
</compile_context>

<pallas_src>
import functools
import math

import numpy as np
import jax
import jax.numpy as jnp
from jax.experimental import pallas as pl
from jax.experimental.pallas import tpu as pltpu

HEAD_SETTINGS = {
    '18': [[64, 128, 256, 512], 128],
    '34': [[64, 128, 256, 512], 256],
    '50': [[256, 512, 1024, 2048], 512],
    '101': [[256, 512, 1024, 2048], 512],
    '152': [[256, 512, 1024, 2048], 768],
}

RESNET_CFG = {
    '18': ('basic', [2, 2, 2, 2]),
    '34': ('basic', [3, 4, 6, 3]),
    '50': ('bottleneck', [3, 4, 6, 3]),
    '101': ('bottleneck', [3, 4, 23, 3]),
    '152': ('bottleneck', [3, 8, 36, 3]),
}

_BN_EPS = 1e-5


def _round_up(x, m):
    return (x + m - 1) // m * m


# ----------------------------------------------------------------------------
# Pallas kernels
# ----------------------------------------------------------------------------
def _matmul_stats_kernel(a_ref, w_ref, o_ref, st_ref, acc_ref):
    """Tiled matmul with f32 accumulator; bf16 output store; at the last K
    step also emits per-M-tile column sums / sums-of-squares (f32) for
    cross-tile BatchNorm statistics."""
    k = pl.program_id(2)

    @pl.when(k == 0)
    def _():
        acc_ref[...] = jnp.zeros_like(acc_ref)

    acc_ref[...] += jnp.dot(a_ref[...], w_ref[...],
                            preferred_element_type=jnp.float32)

    @pl.when(k == pl.num_programs(2) - 1)
    def _():
        y = acc_ref[...]
        o_ref[...] = y.astype(o_ref.dtype)
        srow = jnp.sum(y, axis=0, keepdims=True)            # (1, tn)
        sqrow = jnp.sum(y * y, axis=0, keepdims=True)        # (1, tn)
        rid = jax.lax.broadcasted_iota(jnp.int32, (8, y.shape[1]), 0)
        st_ref[0] = jnp.where(rid == 0, srow,
                              jnp.where(rid == 1, sqrow, 0.0))


def _affine_kernel(y_ref, s_ref, b_ref, o_ref, *, relu):
    z = y_ref[...].astype(jnp.float32) * s_ref[...] + b_ref[...]
    if relu:
        z = jnp.maximum(z, 0.0)
    o_ref[...] = z.astype(o_ref.dtype)


def _affine_res_kernel(y_ref, s_ref, b_ref, r_ref, rs_ref, rb_ref, o_ref, *, relu):
    """relu( BN(main) + BN(residual) ) fused epilogue (f32 VPU math, bf16 io)."""
    z = (y_ref[...].astype(jnp.float32) * s_ref[...] + b_ref[...]
         + r_ref[...].astype(jnp.float32) * rs_ref[...] + rb_ref[...])
    if relu:
        z = jnp.maximum(z, 0.0)
    o_ref[...] = z.astype(o_ref.dtype)


def _max3_kernel(a_ref, b_ref, c_ref, o_ref):
    o_ref[...] = jnp.maximum(jnp.maximum(a_ref[...], b_ref[...]), c_ref[...])


def _add2_kernel(a_ref, b_ref, o_ref):
    o_ref[...] = (a_ref[...].astype(jnp.float32)
                  + b_ref[...].astype(jnp.float32)).astype(o_ref.dtype)


def _rowmat_kernel(r_ref, x_ref, o_ref, *, tb):
    """o[b] = R @ x[b] for tb batch rows per grid step (interpolation /
    adaptive-pool matrix along one spatial axis, channels kept in lanes)."""
    r = r_ref[...]
    for bb in range(tb):
        o_ref[bb] = jnp.dot(r, x_ref[bb].astype(jnp.float32),
                            preferred_element_type=jnp.float32).astype(o_ref.dtype)


# ----------------------------------------------------------------------------
# Pallas wrappers
# ----------------------------------------------------------------------------
def matmul_stats(a, w):
    """a: (M, K), w: (K, N)  ->  y_pad: (Mp, Np) bf16, stats: (mt, 8, Np) f32.
    Inputs are cast to bf16 for the MXU; accumulation and stats stay f32."""
    M, K = a.shape
    _, N = w.shape
    Kp = _round_up(K, 128)
    Np = _round_up(N, 128)
    # Single K step whenever it fits; otherwise largest 2^k tile dividing Kp.
    if Kp <= 2048:
        tk = Kp
    else:
        tk = 128
        for cand in (2048, 1024, 512, 256):
            if Kp % cand == 0:
                tk = cand
                break
    tn = 512 if Np % 512 == 0 else (256 if Np % 256 == 0 else 128)
    tm = 256 if M >= 256 else _round_up(max(M, 8), 8)
    Mp = _round_up(M, tm)
    # v7x has 2 TensorCores: make sure the parallel grid has >=2 iterations.
    if (Mp // tm) * (Np // tn) == 1 and Np >= 256:
        tn = 128

    a_p = jnp.pad(a.astype(jnp.bfloat16), ((0, Mp - M), (0, Kp - K)))
    w_p = jnp.pad(w.astype(jnp.bfloat16), ((0, Kp - K), (0, Np - N)))
    mt, nt, kt = Mp // tm, Np // tn, Kp // tk

    cost = pl.CostEstimate(flops=2 * Mp * Kp * Np, transcendentals=0,
                           bytes_accessed=Mp * Kp * 2 + Kp * Np * 2 + Mp * Np * 2)
    y, stats = pl.pallas_call(
        _matmul_stats_kernel,
        out_shape=(jax.ShapeDtypeStruct((Mp, Np), jnp.bfloat16),
                   jax.ShapeDtypeStruct((mt, 8, Np), jnp.float32)),
        grid=(mt, nt, kt),
        in_specs=[pl.BlockSpec((tm, tk), lambda i, j, k: (i, k)),
                  pl.BlockSpec((tk, tn), lambda i, j, k: (k, j))],
        out_specs=(pl.BlockSpec((tm, tn), lambda i, j, k: (i, j)),
                   pl.BlockSpec((1, 8, tn), lambda i, j, k: (i, 0, j))),
        scratch_shapes=[pltpu.VMEM((tm, tn), jnp.float32)],
        compiler_params=pltpu.CompilerParams(
            dimension_semantics=("parallel", "parallel", "arbitrary")),
        cost_estimate=cost,
    )(a_p, w_p)
    return y, stats


def affine_act(y, scale, offset, res=None, res_scale=None, res_offset=None,
               relu=True):
    """Tiled elementwise epilogue: y*scale+offset (+ res*rs+ro) (+ReLU), bf16 out."""
    Mp, Np = y.shape
    tm = 512 if Mp % 512 == 0 else (256 if Mp % 256 == 0 else Mp)
    tn = 512 if Np % 512 == 0 else (256 if Np % 256 == 0 else 128)
    mt, nt = Mp // tm, Np // tn
    row_spec = pl.BlockSpec((tm, tn), lambda i, j: (i, j))
    vec_spec = pl.BlockSpec((1, tn), lambda i, j: (0, j))
    cp = pltpu.CompilerParams(dimension_semantics=("parallel", "parallel"))
    if res is None:
        return pl.pallas_call(
            functools.partial(_affine_kernel, relu=relu),
            out_shape=jax.ShapeDtypeStruct((Mp, Np), jnp.bfloat16),
            grid=(mt, nt),
            in_specs=[row_spec, vec_spec, vec_spec],
            out_specs=row_spec,
            compiler_params=cp,
        )(y, scale, offset)
    return pl.pallas_call(
        functools.partial(_affine_res_kernel, relu=relu),
        out_shape=jax.ShapeDtypeStruct((Mp, Np), jnp.bfloat16),
        grid=(mt, nt),
        in_specs=[row_spec, vec_spec, vec_spec, row_spec, vec_spec, vec_spec],
        out_specs=row_spec,
        compiler_params=cp,
    )(y, scale, offset, res, res_scale, res_offset)


def _ew_call(kernel, arrays):
    """Generic tiled elementwise kernel over same-shaped arrays; flattens to a
    lane-dense (rows, 128k) layout so stores are unmasked full-lane vst."""
    shape = arrays[0].shape
    dtype = arrays[0].dtype
    T = int(np.prod(shape))
    L = None
    for cand in (1024, 512, 256, 128):        # prefer rows % 8 == 0 (no pad)
        if T % cand == 0 and (T // cand) % 8 == 0:
            L = cand
            break
    if L is None:
        for cand in (1024, 512, 256, 128):
            if T % cand == 0:
                L = cand
                break
    if L is None:
        L = shape[-1]
    rows = T // L
    if rows <= 512:
        tm = rows if rows % 8 == 0 else _round_up(rows, 8)
    elif rows % 512 == 0:
        tm = 512
    elif rows % 256 == 0:
        tm = 256
    elif rows % 128 == 0:
        tm = 128
    else:
        tm = 256
    Mp = _round_up(rows, tm)
    flat = []
    for a in arrays:
        f = a.reshape(rows, L)
        if Mp != rows:
            f = jnp.pad(f, ((0, Mp - rows), (0, 0)))
        flat.append(f)
    spec = pl.BlockSpec((tm, L), lambda i: (i, 0))
    out = pl.pallas_call(
        kernel,
        out_shape=jax.ShapeDtypeStruct((Mp, L), dtype),
        grid=(Mp // tm,),
        in_specs=[spec] * len(flat),
        out_specs=spec,
        compiler_params=pltpu.CompilerParams(dimension_semantics=("parallel",)),
    )(*flat)
    return out[:rows].reshape(shape)


def pallas_add(a, b):
    return _ew_call(_add2_kernel, [a, b])


# ----------------------------------------------------------------------------
# Conv / BN / pool / resize building blocks
# ----------------------------------------------------------------------------
def _extract_patches(x, kh, kw, stride, padding, pad_value=0.0):
    """x: NHWC (bf16) -> patches (N, Ho, Wo, kh*kw, C), built in bf16."""
    N, H, W, C = x.shape
    xp = jnp.pad(x, ((0, 0), (padding, padding), (padding, padding), (0, 0)),
                 constant_values=pad_value)
    Ho = (H + 2 * padding - kh) // stride + 1
    Wo = (W + 2 * padding - kw) // stride + 1
    cols = []
    for dh in range(kh):
        for dw in range(kw):
            cols.append(xp[:, dh:dh + Ho * stride:stride,
                           dw:dw + Wo * stride:stride, :])
    patches = jnp.stack(cols, axis=3)
    return patches, Ho, Wo


def conv_matmul(x, weight, stride=1, padding=0):
    """x: NHWC bf16, weight: (Cout, Cin, kh, kw) f32. Returns padded bf16
    (Mp, Np) matmul output + per-tile f32 stats + logical output shape."""
    Cout, Cin, kh, kw = weight.shape
    N = x.shape[0]
    if kh == 1 and kw == 1 and padding == 0:
        xs = x if stride == 1 else x[:, ::stride, ::stride, :]
        Ho, Wo = xs.shape[1], xs.shape[2]
        A = xs.reshape(N * Ho * Wo, Cin)
    else:
        # TODO(synk): im2col is still materialized in HBM for k>1 convs (in
        # bf16); implicit GEMM with halo DMAs would cut HBM reads by ~kh*kw.
        patches, Ho, Wo = _extract_patches(x, kh, kw, stride, padding, 0.0)
        A = patches.reshape(N * Ho * Wo, kh * kw * Cin)
    Wm = jnp.transpose(weight, (2, 3, 1, 0)).reshape(kh * kw * Cin, Cout)
    y, stats = matmul_stats(A, Wm)
    return y, stats, (N, Ho, Wo, Cout)


def _bn_scale_offset(stats, m_real, c_real, n_pad, eps=_BN_EPS):
    """Reduce per-tile partial sums -> per-channel scale/offset (gamma=1, beta=0)."""
    s = jnp.sum(stats[:, 0, :], axis=0)
    sq = jnp.sum(stats[:, 1, :], axis=0)
    mean = s / m_real
    var = jnp.maximum(sq / m_real - mean * mean, 0.0)
    scale = jax.lax.rsqrt(var + eps)
    offset = -mean * scale
    mask = jnp.arange(n_pad) < c_real
    scale = jnp.where(mask, scale, 0.0)
    offset = jnp.where(mask, offset, 0.0)
    return scale.reshape(1, n_pad), offset.reshape(1, n_pad)


def _unpad_nhwc(y_pad, shp):
    N, H, W, C = shp
    M = N * H * W
    return y_pad[:M, :C].reshape(N, H, W, C)


def conv_bn(x, weight, stride=1, padding=0):
    y, stats, shp = conv_matmul(x, weight, stride, padding)
    M = shp[0] * shp[1] * shp[2]
    scale, offset = _bn_scale_offset(stats, M, shp[3], y.shape[1])
    return y, scale, offset, shp


def conv_bn_act(x, weight, stride=1, padding=0, relu=True):
    # TODO(synk): consecutive 1x1 convs could stay in padded (Mp, Np) form to
    # skip the unpad/re-pad copies (mainly relevant for bottleneck variants).
    y, scale, offset, shp = conv_bn(x, weight, stride, padding)
    return _unpad_nhwc(affine_act(y, scale, offset, relu=relu), shp)


def maxpool2d_3x3_s2(x):
    """Separable 3x3/stride-2/pad-1 max pool (two 3-way max passes, bf16)."""
    # TODO(synk): could be fused into a single halo-DMA Pallas kernel to avoid
    # the intermediate HBM round trip.
    N, H, W, C = x.shape
    xp = jnp.pad(x, ((0, 0), (1, 1), (1, 1), (0, 0)), constant_values=-1e30)
    Ho = (H - 1) // 2 + 1
    Wo = (W - 1) // 2 + 1
    cols = [xp[:, :, dw:dw + Wo * 2:2, :] for dw in range(3)]
    m1 = _ew_call(_max3_kernel, cols)                 # (N, H+2, Wo, C)
    rows = [m1[:, dh:dh + Ho * 2:2, :, :] for dh in range(3)]
    return _ew_call(_max3_kernel, rows)               # (N, Ho, Wo, C)


def _interp_matrix(out_size, in_size):
    """PyTorch bilinear, align_corners=False, along one axis."""
    if out_size == in_size:
        return np.eye(out_size, dtype=np.float32)
    scale = in_size / out_size
    dst = np.arange(out_size, dtype=np.float64)
    src = np.maximum(scale * (dst + 0.5) - 0.5, 0.0)
    i0 = np.minimum(np.floor(src).astype(np.int64), in_size - 1)
    i1 = np.minimum(i0 + 1, in_size - 1)
    w1 = (src - i0).astype(np.float32)
    w0 = 1.0 - w1
    R = np.zeros((out_size, in_size), dtype=np.float32)
    R[np.arange(out_size), i0] += w0
    R[np.arange(out_size), i1] += w1
    return R


def _adaptive_pool_matrix(out_size, in_size):
    R = np.zeros((out_size, in_size), dtype=np.float32)
    for k in range(out_size):
        start = (k * in_size) // out_size
        end = -(-((k + 1) * in_size) // out_size)
        R[k, start:end] = 1.0 / (end - start)
    return R


def _apply_rows(x, R, axis):
    """Apply matrix R (out,in) along spatial axis 1 or 2 of NHWC x, keeping C
    in lanes (no HBM transposes). Batched tb rows per grid step."""
    N, H, W, C = x.shape
    size_in = x.shape[axis]
    size_out = R.shape[0]
    if size_in == 1:  # pure replication
        reps = [1, 1, 1, 1]
        reps[axis] = size_out
        return jnp.tile(x, reps)
    Rj = jnp.asarray(R, jnp.float32)
    if axis == 1:
        xr = x.reshape(N, H, W * C)
        B, cols = N, W * C
    else:
        xr = x.reshape(N * H, W, C)
        B, cols = N * H, C
    tb = 1
    for cand in (8, 4, 2, 1):
        if B % cand == 0:
            tb = cand
            break
    out = pl.pallas_call(
        functools.partial(_rowmat_kernel, tb=tb),
        out_shape=jax.ShapeDtypeStruct((B, size_out, cols), x.dtype),
        grid=(B // tb,),
        in_specs=[pl.BlockSpec((size_out, size_in), lambda b: (0, 0)),
                  pl.BlockSpec((tb, size_in, cols), lambda b: (b, 0, 0))],
        out_specs=pl.BlockSpec((tb, size_out, cols), lambda b: (b, 0, 0)),
        compiler_params=pltpu.CompilerParams(dimension_semantics=("parallel",)),
    )(Rj, xr)
    if axis == 1:
        return out.reshape(N, size_out, W, C)
    return out.reshape(N, H, size_out, C)


def bilinear_resize(x, oh, ow):
    N, H, W, C = x.shape
    if H != oh:
        x = _apply_rows(x, _interp_matrix(oh, H), axis=1)
    if W != ow:
        x = _apply_rows(x, _interp_matrix(ow, W), axis=2)
    return x


def adaptive_avg_pool(x, oh, ow):
    N, H, W, C = x.shape
    if H != oh:
        x = _apply_rows(x, _adaptive_pool_matrix(oh, H), axis=1)
    if W != ow:
        x = _apply_rows(x, _adaptive_pool_matrix(ow, W), axis=2)
    return x


# ----------------------------------------------------------------------------
# Parameters (deterministic xavier_uniform init, zero biases)
# ----------------------------------------------------------------------------
class ParamFactory:
    def __init__(self, seed):
        self._key = jax.random.PRNGKey(seed)

    def _next(self):
        self._key, sub = jax.random.split(self._key)
        return sub

    def conv(self, cout, cin, k):
        fan_in = cin * k * k
        fan_out = cout * k * k
        bound = math.sqrt(6.0 / (fan_in + fan_out))
        return jax.random.uniform(self._next(), (cout, cin, k, k), jnp.float32,
                                  -bound, bound)


def make_resnet_params(pf, variant):
    block_type, depths = RESNET_CFG[variant]
    expansion = 1 if block_type == 'basic' else 4
    params = {'stem': pf.conv(64, 3, 7), 'stages': [], 'block_type': block_type}
    in_c = 64
    for si, (depth, width) in enumerate(zip(depths, [64, 128, 256, 512])):
        blocks = []
        for b in range(depth):
            stride = (1 if si == 0 else 2) if b == 0 else 1
            out_c = width * expansion
            if block_type == 'basic':
                convs = [(pf.conv(width, in_c, 3), stride, 1),
                         (pf.conv(width, width, 3), 1, 1)]
            else:
                convs = [(pf.conv(width, in_c, 1), 1, 0),
                         (pf.conv(width, width, 3), stride, 1),
                         (pf.conv(out_c, width, 1), 1, 0)]
            down = pf.conv(out_c, in_c, 1) if (stride != 1 or in_c != out_c) else None
            blocks.append({'convs': convs, 'down': down, 'down_stride': stride})
            in_c = out_c
        params['stages'].append(blocks)
    return params


def make_uperhead_params(pf, in_channels, channel, scales, num_classes):
    return {
        'scales': scales,
        'ppm_convs': [pf.conv(channel, in_channels[-1], 1) for _ in scales],
        'ppm_bottleneck': pf.conv(channel, in_channels[-1] + channel * len(scales), 3),
        'fpn_in': [pf.conv(channel, c, 1) for c in in_channels[:-1]],
        'fpn_out': [pf.conv(channel, channel, 3) for _ in in_channels[:-1]],
        'bottleneck': pf.conv(channel, channel * len(in_channels), 3),
        'seg_w': pf.conv(num_classes, channel, 1),
        'seg_b': jnp.zeros((num_classes,), jnp.float32),
        'num_classes': num_classes,
    }


# ----------------------------------------------------------------------------
# Forward passes
# ----------------------------------------------------------------------------
def block_forward(x, blk):
    convs = blk['convs']
    y = x
    for (w, stride, pad) in convs[:-1]:
        y = conv_bn_act(y, w, stride=stride, padding=pad, relu=True)
    w_last, s_last, p_last = convs[-1]
    y2, sc2, of2, shp = conv_bn(y, w_last, s_last, p_last)

    if blk['down'] is not None:
        yd, scd, ofd, _ = conv_bn(x, blk['down'], stride=blk['down_stride'],
                                  padding=0)
        r, rs, ro = yd, scd, ofd
    else:
        Mp, Np = y2.shape
        N_, H_, W_, C_ = x.shape
        M_ = N_ * H_ * W_
        r = x.reshape(M_, C_)
        if Mp != M_ or Np != C_:   # only pad when layouts actually differ
            r = jnp.pad(r, ((0, Mp - M_), (0, Np - C_)))
        rs = jnp.ones((1, Np), jnp.float32)
        ro = jnp.zeros((1, Np), jnp.float32)

    out = affine_act(y2, sc2, of2, res=r, res_scale=rs, res_offset=ro, relu=True)
    return _unpad_nhwc(out, shp)


def resnet_forward(p, x):
    y = conv_bn_act(x, p['stem'], stride=2, padding=3, relu=True)
    y = maxpool2d_3x3_s2(y)
    feats = []
    for blocks in p['stages']:
        for blk in blocks:
            y = block_forward(y, blk)
        feats.append(y)
    return feats


def uperhead_forward(p, feats):
    c4 = feats[-1]
    H4, W4 = c4.shape[1], c4.shape[2]
    # PPM
    ppm_outs = [c4]
    for s, w in zip(p['scales'], p['ppm_convs']):
        y = adaptive_avg_pool(c4, s, s)
        y = conv_bn_act(y, w, stride=1, padding=0, relu=True)
        ppm_outs.append(bilinear_resize(y, H4, W4))
    f = conv_bn_act(jnp.concatenate(ppm_outs, axis=-1), p['ppm_bottleneck'],
                    stride=1, padding=1, relu=True)
    # FPN top-down
    fpn_features = [f]
    for i in reversed(range(len(feats) - 1)):
        feat = conv_bn_act(feats[i], p['fpn_in'][i], stride=1, padding=0,
                           relu=True)
        f = pallas_add(feat, bilinear_resize(f, feat.shape[1], feat.shape[2]))
        fpn_features.append(conv_bn_act(f, p['fpn_out'][i], stride=1, padding=1,
                                        relu=True))
    fpn_features.reverse()
    oh, ow = fpn_features[0].shape[1], fpn_features[0].shape[2]
    fpn_features = [fpn_features[0]] + [bilinear_resize(t, oh, ow)
                                        for t in fpn_features[1:]]
    out = conv_bn_act(jnp.concatenate(fpn_features, axis=-1), p['bottleneck'],
                      stride=1, padding=1, relu=True)
    # TODO(synk): Dropout2d(0.1) treated as identity (inference-mode behavior).
    y, _stats, shp = conv_matmul(out, p['seg_w'], stride=1, padding=0)
    N_, H_, W_, Cout = shp
    M = N_ * H_ * W_
    # Keep the 128-lane channel padding for the final bilinear upsample
    # (lane-dense stores); padded channels are exactly zero.
    y_pad = y[:M].reshape(N_, H_, W_, y.shape[1])
    return y_pad, Cout


class CustomCNNPallas:
    def __init__(self, variant='18', num_classes=19, seed=0):
        in_channels, channel = HEAD_SETTINGS[variant]
        pf = ParamFactory(seed)
        self.backbone = make_resnet_params(pf, variant)
        self.head = make_uperhead_params(pf, in_channels, channel, (1, 2, 3, 6),
                                         num_classes)

    def __call__(self, x_nchw):
        # NCHW -> NHWC, single bf16 cast so all im2col/activation traffic is bf16.
        x = jnp.transpose(x_nchw, (0, 2, 3, 1)).astype(jnp.bfloat16)
        feats = resnet_forward(self.backbone, x)
        y_pad, ncls = uperhead_forward(self.head, feats)
        # Upsample the lane-padded seg map first (lane-dense kernel stores),
        # then slice to num_classes; the (zero) bias commutes with bilinear
        # interpolation since interpolation weights sum to one.
        y_pad = bilinear_resize(y_pad, x.shape[1], x.shape[2])
        y = (y_pad[..., :ncls].astype(jnp.float32)
             + self.head['seg_b'].reshape(1, 1, 1, -1))
        return jnp.transpose(y, (0, 3, 1, 2))                 # NHWC -> NCHW


if __name__ == "__main__":
    key = jax.random.PRNGKey(0)
    x = jax.random.normal(key, (2, 3, 64, 64), jnp.float32)  # NCHW, like PyTorch
    model = CustomCNNPallas(variant='18', num_classes=19, seed=0)
    out = jax.block_until_ready(model(x))
    assert out.shape == (2, 19, 64, 64), out.shape
    assert bool(jnp.all(jnp.isfinite(out)))
    print("KERNEL_OK")
</pallas_src>

<mosaic_0001>
module attributes {stable_mosaic.version = 11 : i64} {
  func.func @_matmul_stats_kernel(%arg0: i32, %arg1: i32, %arg2: i32, %arg3: memref<256x256xbf16, #tpu.memory_space<vmem>>, %arg4: memref<256x128xbf16, #tpu.memory_space<vmem>>, %arg5: memref<256x128xbf16, #tpu.memory_space<vmem>>, %arg6: memref<1x8x128xf32, #tpu.memory_space<vmem>>, %arg7: memref<256x128xf32, #tpu.memory_space<vmem>>) attributes {dimension_semantics = [#tpu.dimension_semantics<parallel>, #tpu.dimension_semantics<parallel>, #tpu.dimension_semantics<arbitrary>], iteration_bounds = array<i64: 8, 1, 1>, scalar_prefetch = 0 : i64, scratch_operands = 1 : i64, tpu.core_type = #tpu.core_type<tc>, window_params = [{transform_indices = @transform_0, window_bounds = array<i64: 256, 256>}, {transform_indices = @transform_1, window_bounds = array<i64: 256, 128>}, {transform_indices = @transform_2, window_bounds = array<i64: 256, 128>}, {transform_indices = @transform_3, window_bounds = array<i64: 1, 8, 128>}]} {
    %c0_i32 = arith.constant 0 : i32
    %0 = arith.cmpi eq, %arg2, %c0_i32 : i32
    %1 = arith.extui %0 : i1 to i32
    %c0_i32_0 = arith.constant 0 : i32
    %2 = arith.cmpi ne, %1, %c0_i32_0 : i32
    scf.if %2 {
      %cst_10 = arith.constant 0.000000e+00 : f32
      %12 = vector.broadcast %cst_10 : f32 to vector<256x128xf32>
      %c0_11 = arith.constant 0 : index
      %c0_12 = arith.constant 0 : index
      %13 = vector.load %arg7[%c0_11, %c0_12] : memref<256x128xf32, #tpu.memory_space<vmem>>, vector<256x128xf32>
      tpu.vector_store %arg7[%c0_11, %c0_12], %12 {strides = array<i32>} : memref<256x128xf32, #tpu.memory_space<vmem>>, vector<256x128xf32>,
    } else {
    }
    %c0 = arith.constant 0 : index
    %c0_1 = arith.constant 0 : index
    %3 = vector.load %arg7[%c0, %c0_1] : memref<256x128xf32, #tpu.memory_space<vmem>>, vector<256x128xf32>
    %c0_2 = arith.constant 0 : index
    %c0_3 = arith.constant 0 : index
    %4 = vector.load %arg3[%c0_2, %c0_3] : memref<256x256xbf16, #tpu.memory_space<vmem>>, vector<256x256xbf16>
    %c0_4 = arith.constant 0 : index
    %c0_5 = arith.constant 0 : index
    %5 = vector.load %arg4[%c0_4, %c0_5] : memref<256x128xbf16, #tpu.memory_space<vmem>>, vector<256x128xbf16>
    %cst = arith.constant dense<0.000000e+00> : vector<256x128xf32>
    %6 = tpu.matmul %4, %5, %cst {dimension_numbers = #tpu.dot_dimension_numbers<[1], [0], [0], [1], [0, 0, 1, 1], [], []>} : vector<256x256xbf16>, vector<256x128xbf16>, vector<256x128xf32> -> vector<256x128xf32>
    %7 = arith.addf %3, %6 : vector<256x128xf32>
    %c0_6 = arith.constant 0 : index
    %c0_7 = arith.constant 0 : index
    %8 = vector.load %arg7[%c0_6, %c0_7] : memref<256x128xf32, #tpu.memory_space<vmem>>, vector<256x128xf32>
    tpu.vector_store %arg7[%c0_6, %c0_7], %7 {strides = array<i32>} : memref<256x128xf32, #tpu.memory_space<vmem>>, vector<256x128xf32>,
    %c0_i32_8 = arith.constant 0 : i32
    %9 = arith.cmpi eq, %arg2, %c0_i32_8 : i32
    %10 = arith.extui %9 : i1 to i32
    %c0_i32_9 = arith.constant 0 : i32
    %11 = arith.cmpi ne, %10, %c0_i32_9 : i32
    scf.if %11 {
      %c0_10 = arith.constant 0 : index
      %c0_11 = arith.constant 0 : index
      %12 = vector.load %arg7[%c0_10, %c0_11] : memref<256x128xf32, #tpu.memory_space<vmem>>, vector<256x128xf32>
      %13 = arith.truncf %12 : vector<256x128xf32> to vector<256x128xbf16>
      %c0_12 = arith.constant 0 : index
      %c0_13 = arith.constant 0 : index
      %14 = vector.load %arg5[%c0_12, %c0_13] : memref<256x128xbf16, #tpu.memory_space<vmem>>, vector<256x128xbf16>
      tpu.vector_store %arg5[%c0_12, %c0_13], %13 {strides = array<i32>} : memref<256x128xbf16, #tpu.memory_space<vmem>>, vector<256x128xbf16>,
      %cst_14 = arith.constant dense<0.000000e+00> : vector<128xf32>
      %15 = vector.multi_reduction <add>, %12, %cst_14 [0] : vector<256x128xf32> to vector<128xf32>
      %16 = vector.shape_cast %15 : vector<128xf32> to vector<1x128xf32>
      %17 = arith.mulf %12, %12 : vector<256x128xf32>
      %cst_15 = arith.constant dense<0.000000e+00> : vector<128xf32>
      %18 = vector.multi_reduction <add>, %17, %cst_15 [0] : vector<256x128xf32> to vector<128xf32>
      %19 = vector.shape_cast %18 : vector<128xf32> to vector<1x128xf32>
      %20 = tpu.iota {dimensions = array<i32: 0>} : vector<8x128xi32>
      %c0_i32_16 = arith.constant 0 : i32
      %21 = vector.broadcast %c0_i32_16 : i32 to vector<8x128xi32>
      %22 = arith.cmpi eq, %20, %21 : vector<8x128xi32>
      %c1_i32 = arith.constant 1 : i32
      %23 = vector.broadcast %c1_i32 : i32 to vector<8x128xi32>
      %24 = arith.cmpi eq, %20, %23 : vector<8x128xi32>
      %cst_17 = arith.constant 0.000000e+00 : f32
      %25 = vector.shape_cast %19 : vector<1x128xf32> to vector<1x128xf32>
      %26 = vector.broadcast %25 : vector<1x128xf32> to vector<8x128xf32>
      %27 = vector.broadcast %cst_17 : f32 to vector<8x128xf32>
      %28 = arith.select %24, %26, %27 : vector<8x128xi1>, vector<8x128xf32>
      %29 = vector.shape_cast %16 : vector<1x128xf32> to vector<1x128xf32>
      %30 = vector.broadcast %29 : vector<1x128xf32> to vector<8x128xf32>
      %31 = arith.select %22, %30, %28 : vector<8x128xi1>, vector<8x128xf32>
      %c0_18 = arith.constant 0 : index
      %c0_19 = arith.constant 0 : index
      %c0_20 = arith.constant 0 : index
      %32 = vector.load %arg6[%c0_18, %c0_19, %c0_20] : memref<1x8x128xf32, #tpu.memory_space<vmem>>, vector<1x8x128xf32>
      %33 = vector.shape_cast %32 : vector<1x8x128xf32> to vector<8x128xf32>
      %34 = vector.shape_cast %31 : vector<8x128xf32> to vector<1x8x128xf32>
      tpu.vector_store %arg6[%c0_18, %c0_19, %c0_20], %34 {strides = array<i32>} : memref<1x8x128xf32, #tpu.memory_space<vmem>>, vector<1x8x128xf32>,
    } else {
    }
    return
  }
  func.func @transform_0(%arg0: i32, %arg1: i32, %arg2: i32) -> (i32, i32) {
    %c0_i32 = arith.constant 0 : i32
    return %arg0, %arg2 : i32, i32
  }
  func.func @transform_1(%arg0: i32, %arg1: i32, %arg2: i32) -> (i32, i32) {
    %c0_i32 = arith.constant 0 : i32
    return %arg2, %arg1 : i32, i32
  }
  func.func @transform_2(%arg0: i32, %arg1: i32, %arg2: i32) -> (i32, i32) {
    %c0_i32 = arith.constant 0 : i32
    return %arg0, %arg1 : i32, i32
  }
  func.func @transform_3(%arg0: i32, %arg1: i32, %arg2: i32) -> (i32, i32, i32) {
    %c0_i32 = arith.constant 0 : i32
    %c0_i32_0 = arith.constant 0 : i32
    return %arg0, %c0_i32, %arg1 : i32, i32, i32
  }
}

</mosaic_0001>

<llo_original>
// kernel: tpu_custom_call.1
$region0: #{tpu_custom_call.1}
  #allocation0 [shape = 'u32[]', space=smem, size = 0x4, offset = 0x4, fixed_abs, tag = 'smem constant byte address 0x4 - core index']
  #allocation1 [shape = 'u32[144,128]{1,0:T(1,128)}', space=vmem, size = 0x12000, scoped, tag = 'internal scratch']
  #allocation2 [shape = 'f32[256,128]{1,0:T(8,128)}', space=vmem, size = 0x20000, scoped, tag = 'scratch operand']
  %s0 = inlined_call_operand.hbm [shape: bf16[2048,256], index: 0, kind: input, shape index: {}]
  %s1 = inlined_call_operand.hbm [shape: bf16[256,128], index: 1, kind: input, shape index: {}]
  %s2 = inlined_call_operand.hbm [shape: bf16[2048,128], index: 2, kind: output, shape index: {0}]
  %s3 = inlined_call_operand.hbm [shape: f32[8,8,128], index: 3, kind: output, shape index: {1}]
  %4 = xla_tuple %s2, %s3
  %s5 = sld [smem:[#allocation0]]
  $region65: #{tpu_custom_call.1} parent=0
    _
  %s7 = ssub.s32 1, %s5
  %s8 = scalar_select 0, %s7, %s5
  $region1: #{tpu_custom_call.1} parent=0
    #allocation3 [shape = 'u8[262144]{0}', space=vmem, size = 0x40000, scoped, tag = 'input window, operand 0']
    #allocation4 [shape = 's32[2]{0}', space=sflag, size = 0x8, scoped, tag = 'scoped memory for tpu_custom_call.1']
    #allocation5 [shape = 's32[2]{0}', space=sflag, size = 0x8, scoped, tag = 'scoped memory for tpu_custom_call.1']
    #allocation6 [shape = 'u8[65536]{0}', space=vmem, size = 0x10000, scoped, tag = 'input window, operand 1, single buffered']
    #allocation7 [shape = 's32[1]{0}', space=sflag, size = 0x4, scoped, tag = 'scoped memory for tpu_custom_call.1']
    #allocation8 [shape = 'u8[131072]{0}', space=vmem, size = 0x20000, scoped, tag = 'output window, operand 0']
    #allocation9 [shape = 'u8[8192]{0}', space=vmem, size = 0x2000, scoped, tag = 'output window, operand 1']
    #allocation10 [shape = 's32[2]{0}', space=sflag, size = 0x8, scoped, tag = 'scoped memory for tpu_custom_call.1']
    %9 = vsyncpa [#allocation4], 0
    %s10 = scalar_lea.sflag [#allocation4], 1
    %11 = vsyncpa %s10, 0
    %12 = vsyncpa [#allocation7], 0
    %13 = vsyncpa [#allocation5], 0
    %s14 = scalar_lea.sflag [#allocation5], 1
    %15 = vsyncpa %s14, 0
    %16 = vsyncpa [#allocation10], 0
    %s17 = scalar_lea.sflag [#allocation10], 1
    %18 = vsyncpa %s17, 0
    loop: start=0, step=1, limit=10
    $region2: #{tpu_custom_call.1} parent=1 // loop_pre_header
      _
    $region3: #{tpu_custom_call.1} parent=1 // loop_header
      %s20 = sphi 0, %s24
      %p21 = scmp.ge.s32.totalorder %s20, 10
      %s27 = sphi 0, %s46
      %s28 = sphi 0, %s42
      %s29 = sphi 0, %s38
      %s30 = sphi 0, %s27
      %s31 = sphi 0, %s28
      %s32 = sphi 0, %s29
      %s33 = sphi 0, %s30
      %s34 = sphi 0, %s31
      %s35 = sphi 0, %s32
      %s51 = sphi 0, %s53
      %s54 = sphi 0, %s51
      %s55 = sphi 0, %s54
      %s71 = sphi 0, %s55
      %s79 = sphi 0, %s81
      %s82 = sphi 0, %s79
      %s83 = sphi 0, %s82
      %s99 = sphi 0, %s83
      %s107 = sphi 0, %s109
      %s110 = sphi 0, %s107
      %s111 = sphi 0, %s110
      %s127 = sphi 0, %s111
      %s135 = sphi 0, %s137
      %s138 = sphi 0, %s135
      %s139 = sphi 0, %s138
      %s155 = sphi 0, %s139
    $region4: #{tpu_custom_call.1} parent=1 // loop_header_branch
      %23 = sbr.rel (%p21) target = $region8
    $region5: #{tpu_custom_call.1} parent=1 // loop_body
      %s25 = ssub.s32 %s20, 1
      %s26 = ssub.s32 %s20, 2
      %s36 = sadd.s32 1, %s29
      %p37 = scmp.ge.s32.totalorder %s36, 1
      %s38 = scalar_select %p37, 0, %s36
      %s39 = sadd.s32 1, %s28
      %s40 = scalar_select %p37, %s39, %s28
      %p41 = scmp.ge.s32.totalorder %s40, 1
      %s42 = scalar_select %p41, 0, %s40
      %s43 = sadd.s32 1, %s27
      %s44 = scalar_select %p41, %s43, %s27
      %p45 = scmp.ge.s32.totalorder %s44, 8
      %s46 = scalar_select %p45, 0, %s44
      %s47 = ssub.s32 %s27, %s46
      %s48 = ssub.s32 %s29, %s38
      %s49 = sor.u32 %s47, %s48
      %p50 = scmp.eq.s32.totalorder %s49, 0
      %s52 = sadd.s32 %s51, 1
      %s53 = scalar_select %p50, %s51, %s52
      %p56 = pneg %p50
      %p57 = scmp.eq.s32.totalorder %s20, 7
      %p58 = por %p56, %p57
      %p59 = scmp.ne.s32.totalorder %s51, %s54
      %p60 = scmp.eq.s32.totalorder %s20, 0
      %p61 = por %p59, %p60
      %p62 = scmp.ne.s32.totalorder %s51, %s54
      %p63 = scmp.eq.s32.totalorder %s25, 7
      %p64 = por %p62, %p63
      %p65 = scmp.ne.s32.totalorder %s54, %s55
      %p66 = scmp.eq.s32.totalorder %s25, 0
      %p67 = por %p65, %p66
      %p68 = scmp.ne.s32.totalorder %s54, %s55
      %p69 = scmp.eq.s32.totalorder %s26, 7
      %p70 = por %p68, %p69
      %p72 = scmp.ne.s32.totalorder %s55, %s71
      %p73 = scmp.eq.s32.totalorder %s26, 0
      %p74 = por %p72, %p73
      %s75 = ssub.s32 %s29, %s38
      %s76 = ssub.s32 %s28, %s42
      %s77 = sor.u32 %s75, %s76
      %p78 = scmp.eq.s32.totalorder %s77, 0
      %s80 = sadd.s32 %s79, 1
      %s81 = scalar_select %p78, %s79, %s80
      %p84 = pneg %p78
      %p85 = scmp.eq.s32.totalorder %s20, 7
      %p86 = por %p84, %p85
      %p87 = scmp.ne.s32.totalorder %s79, %s82
      %p88 = scmp.eq.s32.totalorder %s20, 0
      %p89 = por %p87, %p88
      %p90 = scmp.ne.s32.totalorder %s79, %s82
      %p91 = scmp.eq.s32.totalorder %s25, 7
      %p92 = por %p90, %p91
      %p93 = scmp.ne.s32.totalorder %s82, %s83
      %p94 = scmp.eq.s32.totalorder %s25, 0
      %p95 = por %p93, %p94
      %p96 = scmp.ne.s32.totalorder %s82, %s83
      %p97 = scmp.eq.s32.totalorder %s26, 7
      %p98 = por %p96, %p97
      %p100 = scmp.ne.s32.totalorder %s83, %s99
      %p101 = scmp.eq.s32.totalorder %s26, 0
      %p102 = por %p100, %p101
      %s103 = ssub.s32 %s27, %s46
      %s104 = ssub.s32 %s28, %s42
      %s105 = sor.u32 %s103, %s104
      %p106 = scmp.eq.s32.totalorder %s105, 0
      %s108 = sadd.s32 %s107, 1
      %s109 = scalar_select %p106, %s107, %s108
      %p112 = pneg %p106
      %p113 = scmp.eq.s32.totalorder %s20, 7
      %p114 = por %p112, %p113
      %p115 = scmp.ne.s32.totalorder %s107, %s110
      %p116 = scmp.eq.s32.totalorder %s20, 0
      %p117 = por %p115, %p116
      %p118 = scmp.ne.s32.totalorder %s107, %s110
      %p119 = scmp.eq.s32.totalorder %s25, 7
      %p120 = por %p118, %p119
      %p121 = scmp.ne.s32.totalorder %s110, %s111
      %p122 = scmp.eq.s32.totalorder %s25, 0
      %p123 = por %p121, %p122
      %p124 = scmp.ne.s32.totalorder %s110, %s111
      %p125 = scmp.eq.s32.totalorder %s26, 7
      %p126 = por %p124, %p125
      %p128 = scmp.ne.s32.totalorder %s111, %s127
      %p129 = scmp.eq.s32.totalorder %s26, 0
      %p130 = por %p128, %p129
      %s131 = ssub.s32 %s27, %s46
      %s132 = ssub.s32 %s28, %s42
      %s133 = sor.u32 %s131, %s132
      %p134 = scmp.eq.s32.totalorder %s133, 0
      %s136 = sadd.s32 %s135, 1
      %s137 = scalar_select %p134, %s135, %s136
      %p140 = pneg %p134
      %p141 = scmp.eq.s32.totalorder %s20, 7
      %p142 = por %p140, %p141
      %p143 = scmp.ne.s32.totalorder %s135, %s138
      %p144 = scmp.eq.s32.totalorder %s20, 0
      %p145 = por %p143, %p144
      %p146 = scmp.ne.s32.totalorder %s135, %s138
      %p147 = scmp.eq.s32.totalorder %s25, 7
      %p148 = por %p146, %p147
      %p149 = scmp.ne.s32.totalorder %s138, %s139
      %p150 = scmp.eq.s32.totalorder %s25, 0
      %p151 = por %p149, %p150
      %p152 = scmp.ne.s32.totalorder %s138, %s139
      %p153 = scmp.eq.s32.totalorder %s26, 7
      %p154 = por %p152, %p153
      %p156 = scmp.ne.s32.totalorder %s139, %s155
      %p157 = scmp.eq.s32.totalorder %s26, 0
      %p158 = por %p156, %p157
      %p159 = scmp.le.s32.totalorder 1, %s20
      %p160 = scmp.lt.s32.totalorder %s20, 9
      %p161 = pnand %p159, %p160
      %p162 = pneg %p161
      // Predicated region
      $region9: #{tpu_custom_call.1} parent=5 // pred_check
        _
      $region10: #{tpu_custom_call.1} parent=5 // pred_check_branch
        %164 = sbr.rel (%p161) target = $region12
      $region11: #{tpu_custom_call.1} parent=5 // pred_region
        %s165 = ssub.s32 %s20, 1
        // Predicated region
        $region13: #{tpu_custom_call.1} parent=11 // pred_check
          %p166 = pneg %p95
        $region14: #{tpu_custom_call.1} parent=11 // pred_check_branch
          %168 = sbr.rel (%p166) target = $region16
        $region15: #{tpu_custom_call.1} parent=11 // pred_region
          %s169 = smul.u32 32, %s32
          %s171 = ssub.s32 2048, 2048
          %172 = vsyncadd [#allocation7], %s171
          %s173 = sadd.s32 %s31, %s169
          %s174 = smul.addr %s173, 64
          %s175 = scalar_lea.hbm %s1, %s174
          %s176 = sshll.u32 [#allocation6], 4
          %s177 = int_to_ptr.vmem [resolvable:$true] %s176
          %182 = dma.hbm_to_vmem [thread:$0]  %s175, 2048, %s177, [#allocation7], 64, 64, 4
        $region16: #{tpu_custom_call.1} parent=11 // pred_fallthru
          _
      $region12: #{tpu_custom_call.1} parent=5 // pred_fallthru
        _
      %p183 = scmp.lt.s32.totalorder %s20, 8
      // Predicated region
      $region17: #{tpu_custom_call.1} parent=5 // pred_check
        %p184 = pneg %p183
      $region18: #{tpu_custom_call.1} parent=5 // pred_check_branch
        %186 = sbr.rel (%p184) target = $region20
      $region19: #{tpu_custom_call.1} parent=5 // pred_region
        // Predicated region
        $region21: #{tpu_custom_call.1} parent=19 // pred_check
          %p187 = pneg %p61
        $region22: #{tpu_custom_call.1} parent=19 // pred_check_branch
          %189 = sbr.rel (%p187) target = $region24
        $region23: #{tpu_custom_call.1} parent=19 // pred_region
          %s190 = sand.u32 %s51, 1
          %s191 = scalar_lea.sflag [#allocation4], %s190
          %s192 = sand.u32 %s51, 1
          %s193 = smul.addr %s192, 256
          %s194 = scalar_lea.vmem [#allocation3], %s193
          %s195 = smul.u32 32, %s27
          %s196 = smul.u32 2, %s29
          %s198 = ssub.s32 4096, 4096
          %199 = vsyncadd %s191, %s198
          %s200 = smul.addr %s195, 2
          %s201 = sadd.s32 %s196, %s200
          %s202 = smul.addr %s201, 64
          %s203 = scalar_lea.hbm %s0, %s202
          %s204 = sshll.u32 %s194, 4
          %s205 = int_to_ptr.vmem [resolvable:$true] %s204
          %210 = dma.hbm_to_vmem [thread:$0]  %s203, 4096, %s205, %s191, 128, 128, 8
        $region24: #{tpu_custom_call.1} parent=19 // pred_fallthru
          _
      $region20: #{tpu_custom_call.1} parent=5 // pred_fallthru
        _
      %p211 = scmp.le.s32.totalorder 1, %s20
      %p212 = scmp.lt.s32.totalorder %s20, 9
      %p213 = pnand %p211, %p212
      %p214 = pneg %p213
      // Predicated region
      $region25: #{tpu_custom_call.1} parent=5 // pred_check
        _
      $region26: #{tpu_custom_call.1} parent=5 // pred_check_branch
        %216 = sbr.rel (%p213) target = $region28
      $region27: #{tpu_custom_call.1} parent=5 // pred_region
        %s217 = ssub.s32 %s20, 1
        %s218 = sand.u32 %s54, 1
        %s219 = scalar_lea.sflag [#allocation4], %s218
        %s220 = sand.u32 %s54, 1
        %s221 = smul.addr %s220, 256
        %s222 = scalar_lea.vmem [#allocation3], %s221
        // Predicated region
        $region29: #{tpu_custom_call.1} parent=27 // pred_check
          %p223 = pneg %p67
        $region30: #{tpu_custom_call.1} parent=27 // pred_check_branch
          %225 = sbr.rel (%p223) target = $region32
        $region31: #{tpu_custom_call.1} parent=27 // pred_region
          %226 = dma.done %s219, 4096
        $region32: #{tpu_custom_call.1} parent=27 // pred_fallthru
          _
        // Predicated region
        $region33: #{tpu_custom_call.1} parent=27 // pred_check
          %p227 = pneg %p95
        $region34: #{tpu_custom_call.1} parent=27 // pred_check_branch
          %229 = sbr.rel (%p227) target = $region36
        $region35: #{tpu_custom_call.1} parent=27 // pred_region
          %230 = dma.done [#allocation7], 2048
        $region36: #{tpu_custom_call.1} parent=27 // pred_fallthru
          _
        %s231 = sand.u32 %s54, 1
        %s232 = scalar_lea.sflag [#allocation4], %s231
        %s233 = sand.u32 %s54, 1
        %s234 = smul.addr %s233, 256
        %s235 = scalar_lea.vmem [#allocation3], %s234
        %p236 = pneg %p67
        %p237 = pneg %p64
        %p238 = pneg %p95
        %p239 = pneg %p92
        %p240 = pneg %p123
        %p241 = pneg %p120
        %s242 = sand.u32 %s110, 1
        %s243 = scalar_lea.sflag [#allocation5], %s242
        %s244 = sand.u32 %s110, 1
        %s245 = smul.addr %s244, 128
        %s246 = scalar_lea.vmem [#allocation8], %s245
        %p247 = pneg %p151
        %p248 = pneg %p148
        %s249 = sand.u32 %s138, 1
        %s250 = scalar_lea.sflag [#allocation10], %s249
        %s251 = sand.u32 %s138, 1
        %s252 = smul.addr %s251, 8
        %s253 = scalar_lea.vmem [#allocation9], %s252
        %s254 = smul.u32 32, %s30
        %s255 = smul.u32 2, %s32
        %s256 = smul.u32 32, %s32
        %s257 = smul.u32 32, %s30
        %p259 = scmp.eq.s32.totalorder %s32, 0
        // Predicated region
        $region37: #{tpu_custom_call.1} parent=27 // pred_check
          %p260 = pneg %p259
        $region38: #{tpu_custom_call.1} parent=27 // pred_check_branch
          %262 = sbr.rel (%p260) target = $region40
        $region39: #{tpu_custom_call.1} parent=27 // pred_region
          %263 = vst [vmem:[#allocation2] sm:$0xff] 0.0
          %264 = vst [vmem:[#allocation2 + $0x8] sm:$0xff] 0.0
          %265 = vst [vmem:[#allocation2 + $0x10] sm:$0xff] 0.0
          %266 = vst [vmem:[#allocation2 + $0x18] sm:$0xff] 0.0
          %267 = vst [vmem:[#allocation2 + $0x20] sm:$0xff] 0.0
          %268 = vst [vmem:[#allocation2 + $0x28] sm:$0xff] 0.0
          %269 = vst [vmem:[#allocation2 + $0x30] sm:$0xff] 0.0
          %270 = vst [vmem:[#allocation2 + $0x38] sm:$0xff] 0.0
          %271 = vst [vmem:[#allocation2 + $0x40] sm:$0xff] 0.0
          %272 = vst [vmem:[#allocation2 + $0x48] sm:$0xff] 0.0
          %273 = vst [vmem:[#allocation2 + $0x50] sm:$0xff] 0.0
          %274 = vst [vmem:[#allocation2 + $0x58] sm:$0xff] 0.0
          %275 = vst [vmem:[#allocation2 + $0x60] sm:$0xff] 0.0
          %276 = vst [vmem:[#allocation2 + $0x68] sm:$0xff] 0.0
          %277 = vst [vmem:[#allocation2 + $0x70] sm:$0xff] 0.0
          %278 = vst [vmem:[#allocation2 + $0x78] sm:$0xff] 0.0
          %279 = vst [vmem:[#allocation2 + $0x80] sm:$0xff] 0.0
          %280 = vst [vmem:[#allocation2 + $0x88] sm:$0xff] 0.0
          %281 = vst [vmem:[#allocation2 + $0x90] sm:$0xff] 0.0
          %282 = vst [vmem:[#allocation2 + $0x98] sm:$0xff] 0.0
          %283 = vst [vmem:[#allocation2 + $0xa0] sm:$0xff] 0.0
          %284 = vst [vmem:[#allocation2 + $0xa8] sm:$0xff] 0.0
          %285 = vst [vmem:[#allocation2 + $0xb0] sm:$0xff] 0.0
          %286 = vst [vmem:[#allocation2 + $0xb8] sm:$0xff] 0.0
          %287 = vst [vmem:[#allocation2 + $0xc0] sm:$0xff] 0.0
          %288 = vst [vmem:[#allocation2 + $0xc8] sm:$0xff] 0.0
          %289 = vst [vmem:[#allocation2 + $0xd0] sm:$0xff] 0.0
          %290 = vst [vmem:[#allocation2 + $0xd8] sm:$0xff] 0.0
          %291 = vst [vmem:[#allocation2 + $0xe0] sm:$0xff] 0.0
          %292 = vst [vmem:[#allocation2 + $0xe8] sm:$0xff] 0.0
          %293 = vst [vmem:[#allocation2 + $0xf0] sm:$0xff] 0.0
          %294 = vst [vmem:[#allocation2 + $0xf8] sm:$0xff] 0.0
        $region40: #{tpu_custom_call.1} parent=27 // pred_fallthru
          _
        %v295 = vld [vmem:[#allocation2] sm:$0xff]
        %v296 = vld [vmem:[#allocation2 + $0x8] sm:$0xff]
        %v297 = vld [vmem:[#allocation2 + $0x10] sm:$0xff]
        %v298 = vld [vmem:[#allocation2 + $0x18] sm:$0xff]
        %v299 = vld [vmem:[#allocation2 + $0x20] sm:$0xff]
        %v300 = vld [vmem:[#allocation2 + $0x28] sm:$0xff]
        %v301 = vld [vmem:[#allocation2 + $0x30] sm:$0xff]
        %v302 = vld [vmem:[#allocation2 + $0x38] sm:$0xff]
        %v303 = vld [vmem:[#allocation2 + $0x40] sm:$0xff]
        %v304 = vld [vmem:[#allocation2 + $0x48] sm:$0xff]
        %v305 = vld [vmem:[#allocation2 + $0x50] sm:$0xff]
        %v306 = vld [vmem:[#allocation2 + $0x58] sm:$0xff]
        %v307 = vld [vmem:[#allocation2 + $0x60] sm:$0xff]
        %v308 = vld [vmem:[#allocation2 + $0x68] sm:$0xff]
        %v309 = vld [vmem:[#allocation2 + $0x70] sm:$0xff]
        %v310 = vld [vmem:[#allocation2 + $0x78] sm:$0xff]
        %v311 = vld [vmem:[#allocation2 + $0x80] sm:$0xff]
        %v312 = vld [vmem:[#allocation2 + $0x88] sm:$0xff]
        %v313 = vld [vmem:[#allocation2 + $0x90] sm:$0xff]
        %v314 = vld [vmem:[#allocation2 + $0x98] sm:$0xff]
        %v315 = vld [vmem:[#allocation2 + $0xa0] sm:$0xff]
        %v316 = vld [vmem:[#allocation2 + $0xa8] sm:$0xff]
        %v317 = vld [vmem:[#allocation2 + $0xb0] sm:$0xff]
        %v318 = vld [vmem:[#allocation2 + $0xb8] sm:$0xff]
        %v319 = vld [vmem:[#allocation2 + $0xc0] sm:$0xff]
        %v320 = vld [vmem:[#allocation2 + $0xc8] sm:$0xff]
        %v321 = vld [vmem:[#allocation2 + $0xd0] sm:$0xff]
        %v322 = vld [vmem:[#allocation2 + $0xd8] sm:$0xff]
        %v323 = vld [vmem:[#allocation2 + $0xe0] sm:$0xff]
        %v324 = vld [vmem:[#allocation2 + $0xe8] sm:$0xff]
        %v325 = vld [vmem:[#allocation2 + $0xf0] sm:$0xff]
        %v326 = vld [vmem:[#allocation2 + $0xf8] sm:$0xff]
        %v327 = vld [vmem:[%s222] sm:$0xff]
        %v328 = vld [vmem:[%s222 + $0x8] sm:$0xff]
        %v329 = vld [vmem:[%s222 + $0x10] sm:$0xff]
        %v330 = vld [vmem:[%s222 + $0x18] sm:$0xff]
        %v331 = vld [vmem:[%s222 + $0x20] sm:$0xff]
        %v332 = vld [vmem:[%s222 + $0x28] sm:$0xff]
        %v333 = vld [vmem:[%s222 + $0x30] sm:$0xff]
        %v334 = vld [vmem:[%s222 + $0x38] sm:$0xff]
        %v335 = vld [vmem:[%s222 + $0x40] sm:$0xff]
        %v336 = vld [vmem:[%s222 + $0x48] sm:$0xff]
        %v337 = vld [vmem:[%s222 + $0x50] sm:$0xff]
        %v338 = vld [vmem:[%s222 + $0x58] sm:$0xff]
        %v339 = vld [vmem:[%s222 + $0x60] sm:$0xff]
        %v340 = vld [vmem:[%s222 + $0x68] sm:$0xff]
        %v341 = vld [vmem:[%s222 + $0x70] sm:$0xff]
        %v342 = vld [vmem:[%s222 + $0x78] sm:$0xff]
        %v343 = vld [vmem:[%s222 + $0x80] sm:$0xff]
        %v344 = vld [vmem:[%s222 + $0x88] sm:$0xff]
        %v345 = vld [vmem:[%s222 + $0x90] sm:$0xff]
        %v346 = vld [vmem:[%s222 + $0x98] sm:$0xff]
        %v347 = vld [vmem:[%s222 + $0xa0] sm:$0xff]
        %v348 = vld [vmem:[%s222 + $0xa8] sm:$0xff]
        %v349 = vld [vmem:[%s222 + $0xb0] sm:$0xff]
        %v350 = vld [vmem:[%s222 + $0xb8] sm:$0xff]
        %v351 = vld [vmem:[%s222 + $0xc0] sm:$0xff]
        %v352 = vld [vmem:[%s222 + $0xc8] sm:$0xff]
        %v353 = vld [vmem:[%s222 + $0xd0] sm:$0xff]
        %v354 = vld [vmem:[%s222 + $0xd8] sm:$0xff]
        %v355 = vld [vmem:[%s222 + $0xe0] sm:$0xff]
        %v356 = vld [vmem:[%s222 + $0xe8] sm:$0xff]
        %v357 = vld [vmem:[%s222 + $0xf0] sm:$0xff]
        %v358 = vld [vmem:[%s222 + $0xf8] sm:$0xff]
        %v359 = vld [vmem:[#allocation6] sm:$0xf]
        %v360 = vld [vmem:[#allocation6 + $0x4] sm:$0xf]
        %v361 = vld [vmem:[#allocation6 + $0x8] sm:$0xf]
        %v362 = vld [vmem:[#allocation6 + $0xc] sm:$0xf]
        %v363 = vld [vmem:[#allocation6 + $0x10] sm:$0xf]
        %v364 = vld [vmem:[#allocation6 + $0x14] sm:$0xf]
        %v365 = vld [vmem:[#allocation6 + $0x18] sm:$0xf]
        %v366 = vld [vmem:[#allocation6 + $0x1c] sm:$0xf]
        %v367 = vld [vmem:[#allocation6 + $0x20] sm:$0xf]
        %v368 = vld [vmem:[#allocation6 + $0x24] sm:$0xf]
        %v369 = vld [vmem:[#allocation6 + $0x28] sm:$0xf]
        %v370 = vld [vmem:[#allocation6 + $0x2c] sm:$0xf]
        %v371 = vld [vmem:[#allocation6 + $0x30] sm:$0xf]
        %v372 = vld [vmem:[#allocation6 + $0x34] sm:$0xf]
        %v373 = vld [vmem:[#allocation6 + $0x38] sm:$0xf]
        %v374 = vld [vmem:[#allocation6 + $0x3c] sm:$0xf]
        %v375 = vld [vmem:[#allocation6 + $0x40] sm:$0xf]
        %v376 = vld [vmem:[#allocation6 + $0x44] sm:$0xf]
        %v377 = vld [vmem:[#allocation6 + $0x48] sm:$0xf]
        %v378 = vld [vmem:[#allocation6 + $0x4c] sm:$0xf]
        %v379 = vld [vmem:[#allocation6 + $0x50] sm:$0xf]
        %v380 = vld [vmem:[#allocation6 + $0x54] sm:$0xf]
        %v381 = vld [vmem:[#allocation6 + $0x58] sm:$0xf]
        %v382 = vld [vmem:[#allocation6 + $0x5c] sm:$0xf]
        %v383 = vld [vmem:[#allocation6 + $0x60] sm:$0xf]
        %v384 = vld [vmem:[#allocation6 + $0x64] sm:$0xf]
        %v385 = vld [vmem:[#allocation6 + $0x68] sm:$0xf]
        %v386 = vld [vmem:[#allocation6 + $0x6c] sm:$0xf]
        %v387 = vld [vmem:[#allocation6 + $0x70] sm:$0xf]
        %v388 = vld [vmem:[#allocation6 + $0x74] sm:$0xf]
        %v389 = vld [vmem:[#allocation6 + $0x78] sm:$0xf]
        %v390 = vld [vmem:[#allocation6 + $0x7c] sm:$0xf]
        %v423 = vunpack.c.l.b16 %v327
        %v424 = vunpack.c.h.b16 %v327
        %v425 = vunpack.c.l.b16 %v328
        %v426 = vunpack.c.h.b16 %v328
        %v427 = vunpack.c.l.b16 %v329
        %v428 = vunpack.c.h.b16 %v329
        %v429 = vunpack.c.l.b16 %v330
        %v430 = vunpack.c.h.b16 %v330
        %v431 = vunpack.c.l.b16 %v331
        %v432 = vunpack.c.h.b16 %v331
        %v433 = vunpack.c.l.b16 %v332
        %v434 = vunpack.c.h.b16 %v332
        %v435 = vunpack.c.l.b16 %v333
        %v436 = vunpack.c.h.b16 %v333
        %v437 = vunpack.c.l.b16 %v334
        %v438 = vunpack.c.h.b16 %v334
        %v439 = vunpack.c.l.b16 %v335
        %v440 = vunpack.c.h.b16 %v335
        %v441 = vunpack.c.l.b16 %v336
        %v442 = vunpack.c.h.b16 %v336
        %v443 = vunpack.c.l.b16 %v337
        %v444 = vunpack.c.h.b16 %v337
        %v445 = vunpack.c.l.b16 %v338
        %v446 = vunpack.c.h.b16 %v338
        %v447 = vunpack.c.l.b16 %v339
        %v448 = vunpack.c.h.b16 %v339
        %v449 = vunpack.c.l.b16 %v340
        %v450 = vunpack.c.h.b16 %v340
        %v451 = vunpack.c.l.b16 %v341
        %v452 = vunpack.c.h.b16 %v341
        %v453 = vunpack.c.l.b16 %v342
        %v454 = vunpack.c.h.b16 %v342
        %v455 = vunpack.c.l.b16 %v343
        %v456 = vunpack.c.h.b16 %v343
        %v457 = vunpack.c.l.b16 %v344
        %v458 = vunpack.c.h.b16 %v344
        %v459 = vunpack.c.l.b16 %v345
        %v460 = vunpack.c.h.b16 %v345
        %v461 = vunpack.c.l.b16 %v346
        %v462 = vunpack.c.h.b16 %v346
        %v463 = vunpack.c.l.b16 %v347
        %v464 = vunpack.c.h.b16 %v347
        %v465 = vunpack.c.l.b16 %v348
        %v466 = vunpack.c.h.b16 %v348
        %v467 = vunpack.c.l.b16 %v349
        %v468 = vunpack.c.h.b16 %v349
        %v469 = vunpack.c.l.b16 %v350
        %v470 = vunpack.c.h.b16 %v350
        %v471 = vunpack.c.l.b16 %v351
        %v472 = vunpack.c.h.b16 %v351
        %v473 = vunpack.c.l.b16 %v352
        %v474 = vunpack.c.h.b16 %v352
        %v475 = vunpack.c.l.b16 %v353
        %v476 = vunpack.c.h.b16 %v353
        %v477 = vunpack.c.l.b16 %v354
        %v478 = vunpack.c.h.b16 %v354
        %v479 = vunpack.c.l.b16 %v355
        %v480 = vunpack.c.h.b16 %v355
        %v481 = vunpack.c.l.b16 %v356
        %v482 = vunpack.c.h.b16 %v356
        %v483 = vunpack.c.l.b16 %v357
        %v484 = vunpack.c.h.b16 %v357
        %v485 = vunpack.c.l.b16 %v358
        %v486 = vunpack.c.h.b16 %v358
        %v487 = vpack.c.b16 %v425, %v423
        %v488 = vpack.c.b16 %v426, %v424
        %v489 = vpack.c.b16 %v429, %v427
        %v490 = vpack.c.b16 %v430, %v428
        %v491 = vpack.c.b16 %v433, %v431
        %v492 = vpack.c.b16 %v434, %v432
        %v493 = vpack.c.b16 %v437, %v435
        %v494 = vpack.c.b16 %v438, %v436
        %v495 = vpack.c.b16 %v441, %v439
        %v496 = vpack.c.b16 %v442, %v440
        %v497 = vpack.c.b16 %v445, %v443
        %v498 = vpack.c.b16 %v446, %v444
        %v499 = vpack.c.b16 %v449, %v447
        %v500 = vpack.c.b16 %v450, %v448
        %v501 = vpack.c.b16 %v453, %v451
        %v502 = vpack.c.b16 %v454, %v452
        %v503 = vpack.c.b16 %v457, %v455
        %v504 = vpack.c.b16 %v458, %v456
        %v505 = vpack.c.b16 %v461, %v459
        %v506 = vpack.c.b16 %v462, %v460
        %v507 = vpack.c.b16 %v465, %v463
        %v508 = vpack.c.b16 %v466, %v464
        %v509 = vpack.c.b16 %v469, %v467
        %v510 = vpack.c.b16 %v470, %v468
        %v511 = vpack.c.b16 %v473, %v471
        %v512 = vpack.c.b16 %v474, %v472
        %v513 = vpack.c.b16 %v477, %v475
        %v514 = vpack.c.b16 %v478, %v476
        %v515 = vpack.c.b16 %v481, %v479
        %v516 = vpack.c.b16 %v482, %v480
        %v517 = vpack.c.b16 %v485, %v483
        %v518 = vpack.c.b16 %v486, %v484
        %v583 = vunpack.c.l.b16 %v359
        %v584 = vunpack.c.l.b16 %v360
        %v585 = vunpack.c.l.b16 %v361
        %v586 = vunpack.c.l.b16 %v362
        %v587 = vunpack.c.l.b16 %v363
        %v588 = vunpack.c.l.b16 %v364
        %v589 = vunpack.c.l.b16 %v365
        %v590 = vunpack.c.l.b16 %v366
        %v591 = vunpack.c.l.b16 %v367
        %v592 = vunpack.c.l.b16 %v368
        %v593 = vunpack.c.l.b16 %v369
        %v594 = vunpack.c.l.b16 %v370
        %v595 = vunpack.c.l.b16 %v371
        %v596 = vunpack.c.l.b16 %v372
        %v597 = vunpack.c.l.b16 %v373
        %v598 = vunpack.c.l.b16 %v374
        %v599 = vunpack.c.l.b16 %v375
        %v600 = vunpack.c.l.b16 %v376
        %v601 = vunpack.c.l.b16 %v377
        %v602 = vunpack.c.l.b16 %v378
        %v603 = vunpack.c.l.b16 %v379
        %v604 = vunpack.c.l.b16 %v380
        %v605 = vunpack.c.l.b16 %v381
        %v606 = vunpack.c.l.b16 %v382
        %v607 = vunpack.c.l.b16 %v383
        %v608 = vunpack.c.l.b16 %v384
        %v609 = vunpack.c.l.b16 %v385
        %v610 = vunpack.c.l.b16 %v386
        %v611 = vunpack.c.l.b16 %v387
        %v612 = vunpack.c.l.b16 %v388
        %v613 = vunpack.c.l.b16 %v389
        %v614 = vunpack.c.l.b16 %v390
        %v615 = vpack.c.b16 %v584, %v583
        %v616 = vpack.c.b16 %v586, %v585
        %v617 = vpack.c.b16 %v588, %v587
        %v618 = vpack.c.b16 %v590, %v589
        %v619 = vpack.c.b16 %v592, %v591
        %v620 = vpack.c.b16 %v594, %v593
        %v621 = vpack.c.b16 %v596, %v595
        %v622 = vpack.c.b16 %v598, %v597
        %v623 = vpack.c.b16 %v600, %v599
        %v624 = vpack.c.b16 %v602, %v601
        %v625 = vpack.c.b16 %v604, %v603
        %v626 = vpack.c.b16 %v606, %v605
        %v627 = vpack.c.b16 %v608, %v607
        %v628 = vpack.c.b16 %v610, %v609
        %v629 = vpack.c.b16 %v612, %v611
        %v630 = vpack.c.b16 %v614, %v613
        %647 = vmatprep.subr.bf16.mxu0 0
        %648 = vmatpush1.bf16.msra.mxu0 %v615
        %649 = vmatprep.subr.bf16.mxu0 0
        %650 = vmatpush1.bf16.msra.mxu0 %v616
        %651 = vmatprep.subr.bf16.mxu0 0
        %652 = vmatpush1.bf16.msra.mxu0 %v617
        %653 = vmatprep.subr.bf16.mxu0 0
        %654 = vmatpush1.bf16.msra.mxu0 %v618
        %655 = vmatprep.subr.bf16.mxu0 0
        %656 = vmatpush1.bf16.msra.mxu0 %v619
        %657 = vmatprep.subr.bf16.mxu0 0
        %658 = vmatpush1.bf16.msra.mxu0 %v620
        %659 = vmatprep.subr.bf16.mxu0 0
        %660 = vmatpush1.bf16.msra.mxu0 %v621
        %661 = vmatprep.subr.bf16.mxu0 0
        %662 = vmatpush1.bf16.msra.mxu0 %v622
        %663 = vmatprep.subr.bf16.mxu0 0
        %664 = vmatpush1.bf16.msra.mxu0 %v623
        %665 = vmatprep.subr.bf16.mxu0 0
        %666 = vmatpush1.bf16.msra.mxu0 %v624
        %667 = vmatprep.subr.bf16.mxu0 0
        %668 = vmatpush1.bf16.msra.mxu0 %v625
        %669 = vmatprep.subr.bf16.mxu0 0
        %670 = vmatpush1.bf16.msra.mxu0 %v626
        %671 = vmatprep.subr.bf16.mxu0 0
        %672 = vmatpush1.bf16.msra.mxu0 %v627
        %673 = vmatprep.subr.bf16.mxu0 0
        %674 = vmatpush1.bf16.msra.mxu0 %v628
        %675 = vmatprep.subr.bf16.mxu0 0
        %676 = vmatpush1.bf16.msra.mxu0 %v629
        %677 = vmatprep.subr.bf16.mxu0 0
        %678 = vmatpush1.bf16.msra.mxu0 %v630
        %679 = vmatprep.mubr.bf16.mxu0 %v488
        %680 = vmatmul.mubr.bf16.gmra.mrb[0].mxu0 %v487
        %v681 = vpop.f32.mrb[0].mxu0
        %v682 = vadd.f32 0.0, %v681
        %v683 = vpop.f32.mrb[0].mxu0
        %v684 = vpop.f32.mrb[0].mxu0
        %v685 = vadd.f32 0.0, %v684
        %v686 = vpop.f32.mrb[0].mxu0
        %687 = vmatprep.mubr.bf16.mxu0 %v490
        %688 = vmatmul.mubr.bf16.gmra.mrb[0].mxu0 %v489
        %v689 = vpop.f32.mrb[0].mxu0
        %v690 = vadd.f32 0.0, %v689
        %v691 = vpop.f32.mrb[0].mxu0
        %v692 = vpop.f32.mrb[0].mxu0
        %v693 = vadd.f32 0.0, %v692
        %v694 = vpop.f32.mrb[0].mxu0
        %695 = vmatprep.mubr.bf16.mxu0 %v492
        %696 = vmatmul.mubr.bf16.gmra.mrb[0].mxu0 %v491
        %v697 = vpop.f32.mrb[0].mxu0
        %v698 = vadd.f32 0.0, %v697
        %v699 = vpop.f32.mrb[0].mxu0
        %v700 = vpop.f32.mrb[0].mxu0
        %v701 = vadd.f32 0.0, %v700
        %v702 = vpop.f32.mrb[0].mxu0
        %703 = vmatprep.mubr.bf16.mxu0 %v494
        %704 = vmatmul.mubr.bf16.gmra.mrb[0].mxu0 %v493
        %v705 = vpop.f32.mrb[0].mxu0
        %v706 = vadd.f32 0.0, %v705
        %v707 = vpop.f32.mrb[0].mxu0
        %v708 = vpop.f32.mrb[0].mxu0
        %v709 = vadd.f32 0.0, %v708
        %v710 = vpop.f32.mrb[0].mxu0
        %711 = vmatprep.mubr.bf16.mxu0 %v496
        %712 = vmatmul.mubr.bf16.gmra.mrb[0].mxu0 %v495
        %v713 = vpop.f32.mrb[0].mxu0
        %v714 = vadd.f32 0.0, %v713
        %v715 = vpop.f32.mrb[0].mxu0
        %v716 = vpop.f32.mrb[0].mxu0
        %v717 = vadd.f32 0.0, %v716
        %v718 = vpop.f32.mrb[0].mxu0
        %719 = vmatprep.mubr.bf16.mxu0 %v498
        %720 = vmatmul.mubr.bf16.gmra.mrb[0].mxu0 %v497
        %v721 = vpop.f32.mrb[0].mxu0
        %v722 = vadd.f32 0.0, %v721
        %v723 = vpop.f32.mrb[0].mxu0
        %v724 = vpop.f32.mrb[0].mxu0
        %v725 = vadd.f32 0.0, %v724
        %v726 = vpop.f32.mrb[0].mxu0
        %727 = vmatprep.mubr.bf16.mxu0 %v500
        %728 = vmatmul.mubr.bf16.gmra.mrb[0].mxu0 %v499
        %v729 = vpop.f32.mrb[0].mxu0
        %v730 = vadd.f32 0.0, %v729
        %v731 = vpop.f32.mrb[0].mxu0
        %v732 = vpop.f32.mrb[0].mxu0
        %v733 = vadd.f32 0.0, %v732
        %v734 = vpop.f32.mrb[0].mxu0
        %735 = vmatprep.mubr.bf16.mxu0 %v502
        %736 = vmatmul.mubr.bf16.gmra.mrb[0].mxu0 %v501
        %v737 = vpop.f32.mrb[0].mxu0
        %v738 = vadd.f32 0.0, %v737
        %v739 = vpop.f32.mrb[0].mxu0
        %v740 = vpop.f32.mrb[0].mxu0
        %v741 = vadd.f32 0.0, %v740
        %v742 = vpop.f32.mrb[0].mxu0
        %743 = vmatprep.mubr.bf16.mxu0 %v504
        %744 = vmatmul.mubr.bf16.gmra.mrb[0].mxu0 %v503
        %v745 = vpop.f32.mrb[0].mxu0
        %v746 = vadd.f32 0.0, %v745
        %v747 = vpop.f32.mrb[0].mxu0
        %v748 = vpop.f32.mrb[0].mxu0
        %v749 = vadd.f32 0.0, %v748
        %v750 = vpop.f32.mrb[0].mxu0
        %751 = vmatprep.mubr.bf16.mxu0 %v506
        %752 = vmatmul.mubr.bf16.gmra.mrb[0].mxu0 %v505
        %v753 = vpop.f32.mrb[0].mxu0
        %v754 = vadd.f32 0.0, %v753
        %v755 = vpop.f32.mrb[0].mxu0
        %v756 = vpop.f32.mrb[0].mxu0
        %v757 = vadd.f32 0.0, %v756
        %v758 = vpop.f32.mrb[0].mxu0
        %759 = vmatprep.mubr.bf16.mxu0 %v508
        %760 = vmatmul.mubr.bf16.gmra.mrb[0].mxu0 %v507
        %v761 = vpop.f32.mrb[0].mxu0
        %v762 = vadd.f32 0.0, %v761
        %v763 = vpop.f32.mrb[0].mxu0
        %v764 = vpop.f32.mrb[0].mxu0
        %v765 = vadd.f32 0.0, %v764
        %v766 = vpop.f32.mrb[0].mxu0
        %767 = vmatprep.mubr.bf16.mxu0 %v510
        %768 = vmatmul.mubr.bf16.gmra.mrb[0].mxu0 %v509
        %v769 = vpop.f32.mrb[0].mxu0
        %v770 = vadd.f32 0.0, %v769
        %v771 = vpop.f32.mrb[0].mxu0
        %v772 = vpop.f32.mrb[0].mxu0
        %v773 = vadd.f32 0.0, %v772
        %v774 = vpop.f32.mrb[0].mxu0
        %775 = vmatprep.mubr.bf16.mxu0 %v512
        %776 = vmatmul.mubr.bf16.gmra.mrb[0].mxu0 %v511
        %v777 = vpop.f32.mrb[0].mxu0
        %v778 = vadd.f32 0.0, %v777
        %v779 = vpop.f32.mrb[0].mxu0
        %v780 = vpop.f32.mrb[0].mxu0
        %v781 = vadd.f32 0.0, %v780
        %v782 = vpop.f32.mrb[0].mxu0
        %783 = vmatprep.mubr.bf16.mxu0 %v514
        %784 = vmatmul.mubr.bf16.gmra.mrb[0].mxu0 %v513
        %v785 = vpop.f32.mrb[0].mxu0
        %v786 = vadd.f32 0.0, %v785
        %v787 = vpop.f32.mrb[0].mxu0
        %v788 = vpop.f32.mrb[0].mxu0
        %v789 = vadd.f32 0.0, %v788
        %v790 = vpop.f32.mrb[0].mxu0
        %791 = vmatprep.mubr.bf16.mxu0 %v516
        %792 = vmatmul.mubr.bf16.gmra.mrb[0].mxu0 %v515
        %v793 = vpop.f32.mrb[0].mxu0
        %v794 = vadd.f32 0.0, %v793
        %v795 = vpop.f32.mrb[0].mxu0
        %v796 = vpop.f32.mrb[0].mxu0
        %v797 = vadd.f32 0.0, %v796
        %v798 = vpop.f32.mrb[0].mxu0
        %799 = vmatprep.mubr.bf16.mxu0 %v518
        %800 = vmatmul.mubr.bf16.gmra.mrb[0].mxu0 %v517
        %v801 = vpop.f32.mrb[0].mxu0
        %v802 = vadd.f32 0.0, %v801
        %v803 = vpop.f32.mrb[0].mxu0
        %v804 = vpop.f32.mrb[0].mxu0
        %v805 = vadd.f32 0.0, %v804
        %v806 = vpop.f32.mrb[0].mxu0
        %807 = vdwg.mxu0
        %v808 = vadd.f32 %v295, %v682
        %v809 = vadd.f32 %v296, %v685
        %v810 = vadd.f32 %v297, %v690
        %v811 = vadd.f32 %v298, %v693
        %v812 = vadd.f32 %v299, %v698
        %v813 = vadd.f32 %v300, %v701
        %v814 = vadd.f32 %v301, %v706
        %v815 = vadd.f32 %v302, %v709
        %v816 = vadd.f32 %v303, %v714
        %v817 = vadd.f32 %v304, %v717
        %v818 = vadd.f32 %v305, %v722
        %v819 = vadd.f32 %v306, %v725
        %v820 = vadd.f32 %v307, %v730
        %v821 = vadd.f32 %v308, %v733
        %v822 = vadd.f32 %v309, %v738
        %v823 = vadd.f32 %v310, %v741
        %v824 = vadd.f32 %v311, %v746
        %v825 = vadd.f32 %v312, %v749
        %v826 = vadd.f32 %v313, %v754
        %v827 = vadd.f32 %v314, %v757
        %v828 = vadd.f32 %v315, %v762
        %v829 = vadd.f32 %v316, %v765
        %v830 = vadd.f32 %v317, %v770
        %v831 = vadd.f32 %v318, %v773
        %v832 = vadd.f32 %v319, %v778
        %v833 = vadd.f32 %v320, %v781
        %v834 = vadd.f32 %v321, %v786
        %v835 = vadd.f32 %v322, %v789
        %v836 = vadd.f32 %v323, %v794
        %v837 = vadd.f32 %v324, %v797
        %v838 = vadd.f32 %v325, %v802
        %v839 = vadd.f32 %v326, %v805
        %840 = vst [vmem:[#allocation2] sm:$0xff] %v808
        %841 = vst [vmem:[#allocation2 + $0x8] sm:$0xff] %v809
        %842 = vst [vmem:[#allocation2 + $0x10] sm:$0xff] %v810
        %843 = vst [vmem:[#allocation2 + $0x18] sm:$0xff] %v811
        %844 = vst [vmem:[#allocation2 + $0x20] sm:$0xff] %v812
        %845 = vst [vmem:[#allocation2 + $0x28] sm:$0xff] %v813
        %846 = vst [vmem:[#allocation2 + $0x30] sm:$0xff] %v814
        %847 = vst [vmem:[#allocation2 + $0x38] sm:$0xff] %v815
        %848 = vst [vmem:[#allocation2 + $0x40] sm:$0xff] %v816
        %849 = vst [vmem:[#allocation2 + $0x48] sm:$0xff] %v817
        %850 = vst [vmem:[#allocation2 + $0x50] sm:$0xff] %v818
        %851 = vst [vmem:[#allocation2 + $0x58] sm:$0xff] %v819
        %852 = vst [vmem:[#allocation2 + $0x60] sm:$0xff] %v820
        %853 = vst [vmem:[#allocation2 + $0x68] sm:$0xff] %v821
        %854 = vst [vmem:[#allocation2 + $0x70] sm:$0xff] %v822
        %855 = vst [vmem:[#allocation2 + $0x78] sm:$0xff] %v823
        %856 = vst [vmem:[#allocation2 + $0x80] sm:$0xff] %v824
        %857 = vst [vmem:[#allocation2 + $0x88] sm:$0xff] %v825
        %858 = vst [vmem:[#allocation2 + $0x90] sm:$0xff] %v826
        %859 = vst [vmem:[#allocation2 + $0x98] sm:$0xff] %v827
        %860 = vst [vmem:[#allocation2 + $0xa0] sm:$0xff] %v828
        %861 = vst [vmem:[#allocation2 + $0xa8] sm:$0xff] %v829
        %862 = vst [vmem:[#allocation2 + $0xb0] sm:$0xff] %v830
        %863 = vst [vmem:[#allocation2 + $0xb8] sm:$0xff] %v831
        %864 = vst [vmem:[#allocation2 + $0xc0] sm:$0xff] %v832
        %865 = vst [vmem:[#allocation2 + $0xc8] sm:$0xff] %v833
        %866 = vst [vmem:[#allocation2 + $0xd0] sm:$0xff] %v834
        %867 = vst [vmem:[#allocation2 + $0xd8] sm:$0xff] %v835
        %868 = vst [vmem:[#allocation2 + $0xe0] sm:$0xff] %v836
        %869 = vst [vmem:[#allocation2 + $0xe8] sm:$0xff] %v837
        %870 = vst [vmem:[#allocation2 + $0xf0] sm:$0xff] %v838
        %871 = vst [vmem:[#allocation2 + $0xf8] sm:$0xff] %v839
        // Predicated region
        $region41: #{tpu_custom_call.1} parent=27 // pred_check
          %p872 = pneg %p259
        $region42: #{tpu_custom_call.1} parent=27 // pred_check_branch
          %874 = sbr.rel (%p872) target = $region44
        $region43: #{tpu_custom_call.1} parent=27 // pred_region
          %v875 = vld [vmem:[#allocation2] sm:$0xff]
          %v876 = vld [vmem:[#allocation2 + $0x8] sm:$0xff]
          %v877 = vld [vmem:[#allocation2 + $0x10] sm:$0xff]
          %v878 = vld [vmem:[#allocation2 + $0x18] sm:$0xff]
          %v879 = vld [vmem:[#allocation2 + $0x20] sm:$0xff]
          %v880 = vld [vmem:[#allocation2 + $0x28] sm:$0xff]
          %v881 = vld [vmem:[#allocation2 + $0x30] sm:$0xff]
          %v882 = vld [vmem:[#allocation2 + $0x38] sm:$0xff]
          %v883 = vld [vmem:[#allocation2 + $0x40] sm:$0xff]
          %v884 = vld [vmem:[#allocation2 + $0x48] sm:$0xff]
          %v885 = vld [vmem:[#allocation2 + $0x50] sm:$0xff]
          %v886 = vld [vmem:[#allocation2 + $0x58] sm:$0xff]
          %v887 = vld [vmem:[#allocation2 + $0x60] sm:$0xff]
          %v888 = vld [vmem:[#allocation2 + $0x68] sm:$0xff]
          %v889 = vld [vmem:[#allocation2 + $0x70] sm:$0xff]
          %v890 = vld [vmem:[#allocation2 + $0x78] sm:$0xff]
          %v891 = vld [vmem:[#allocation2 + $0x80] sm:$0xff]
          %v892 = vld [vmem:[#allocation2 + $0x88] sm:$0xff]
          %v893 = vld [vmem:[#allocation2 + $0x90] sm:$0xff]
          %v894 = vld [vmem:[#allocation2 + $0x98] sm:$0xff]
          %v895 = vld [vmem:[#allocation2 + $0xa0] sm:$0xff]
          %v896 = vld [vmem:[#allocation2 + $0xa8] sm:$0xff]
          %v897 = vld [vmem:[#allocation2 + $0xb0] sm:$0xff]
          %v898 = vld [vmem:[#allocation2 + $0xb8] sm:$0xff]
          %v899 = vld [vmem:[#allocation2 + $0xc0] sm:$0xff]
          %v900 = vld [vmem:[#allocation2 + $0xc8] sm:$0xff]
          %v901 = vld [vmem:[#allocation2 + $0xd0] sm:$0xff]
          %v902 = vld [vmem:[#allocation2 + $0xd8] sm:$0xff]
          %v903 = vld [vmem:[#allocation2 + $0xe0] sm:$0xff]
          %v904 = vld [vmem:[#allocation2 + $0xe8] sm:$0xff]
          %v905 = vld [vmem:[#allocation2 + $0xf0] sm:$0xff]
          %v906 = vld [vmem:[#allocation2 + $0xf8] sm:$0xff]
          %v907 = vpack.c.bf16 %v876, %v875
          %v908 = vpack.c.bf16 %v878, %v877
          %v909 = vpack.c.bf16 %v880, %v879
          %v910 = vpack.c.bf16 %v882, %v881
          %v911 = vpack.c.bf16 %v884, %v883
          %v912 = vpack.c.bf16 %v886, %v885
          %v913 = vpack.c.bf16 %v888, %v887
          %v914 = vpack.c.bf16 %v890, %v889
          %v915 = vpack.c.bf16 %v892, %v891
          %v916 = vpack.c.bf16 %v894, %v893
          %v917 = vpack.c.bf16 %v896, %v895
          %v918 = vpack.c.bf16 %v898, %v897
          %v919 = vpack.c.bf16 %v900, %v899
          %v920 = vpack.c.bf16 %v902, %v901
          %v921 = vpack.c.bf16 %v904, %v903
          %v922 = vpack.c.bf16 %v906, %v905
          %v939 = vunpack.c.l.b16 %v907
          %v940 = vunpack.c.h.b16 %v907
          %v941 = vunpack.c.l.b16 %v908
          %v942 = vunpack.c.h.b16 %v908
          %v943 = vunpack.c.l.b16 %v909
          %v944 = vunpack.c.h.b16 %v909
          %v945 = vunpack.c.l.b16 %v910
          %v946 = vunpack.c.h.b16 %v910
          %v947 = vunpack.c.l.b16 %v911
          %v948 = vunpack.c.h.b16 %v911
          %v949 = vunpack.c.l.b16 %v912
          %v950 = vunpack.c.h.b16 %v912
          %v951 = vunpack.c.l.b16 %v913
          %v952 = vunpack.c.h.b16 %v913
          %v953 = vunpack.c.l.b16 %v914
          %v954 = vunpack.c.h.b16 %v914
          %v955 = vunpack.c.l.b16 %v915
          %v956 = vunpack.c.h.b16 %v915
          %v957 = vunpack.c.l.b16 %v916
          %v958 = vunpack.c.h.b16 %v916
          %v959 = vunpack.c.l.b16 %v917
          %v960 = vunpack.c.h.b16 %v917
          %v961 = vunpack.c.l.b16 %v918
          %v962 = vunpack.c.h.b16 %v918
          %v963 = vunpack.c.l.b16 %v919
          %v964 = vunpack.c.h.b16 %v919
          %v965 = vunpack.c.l.b16 %v920
          %v966 = vunpack.c.h.b16 %v920
          %v967 = vunpack.c.l.b16 %v921
          %v968 = vunpack.c.h.b16 %v921
          %v969 = vunpack.c.l.b16 %v922
          %v970 = vunpack.c.h.b16 %v922
          %v971 = vpack.c.b16 %v939, %v939
          %v972 = vpack.c.b16 %v940, %v940
          %v973 = vpack.c.b16 %v941, %v941
          %v974 = vpack.c.b16 %v942, %v942
          %v975 = vpack.c.b16 %v943, %v943
          %v976 = vpack.c.b16 %v944, %v944
          %v977 = vpack.c.b16 %v945, %v945
          %v978 = vpack.c.b16 %v946, %v946
          %v979 = vpack.c.b16 %v947, %v947
          %v980 = vpack.c.b16 %v948, %v948
          %v981 = vpack.c.b16 %v949, %v949
          %v982 = vpack.c.b16 %v950, %v950
          %v983 = vpack.c.b16 %v951, %v951
          %v984 = vpack.c.b16 %v952, %v952
          %v985 = vpack.c.b16 %v953, %v953
          %v986 = vpack.c.b16 %v954, %v954
          %v987 = vpack.c.b16 %v955, %v955
          %v988 = vpack.c.b16 %v956, %v956
          %v989 = vpack.c.b16 %v957, %v957
          %v990 = vpack.c.b16 %v958, %v958
          %v991 = vpack.c.b16 %v959, %v959
          %v992 = vpack.c.b16 %v960, %v960
          %v993 = vpack.c.b16 %v961, %v961
          %v994 = vpack.c.b16 %v962, %v962
          %v995 = vpack.c.b16 %v963, %v963
          %v996 = vpack.c.b16 %v964, %v964
          %v997 = vpack.c.b16 %v965, %v965
          %v998 = vpack.c.b16 %v966, %v966
          %v999 = vpack.c.b16 %v967, %v967
          %v1000 = vpack.c.b16 %v968, %v968
          %v1001 = vpack.c.b16 %v969, %v969
          %v1002 = vpack.c.b16 %v970, %v970
          %1035 = vst [vmem:[%s246] sm:$0xf] %v971
          %1036 = vst [vmem:[%s246 + $0x4] sm:$0xf] %v972
          %1037 = vst [vmem:[%s246 + $0x8] sm:$0xf] %v973
          %1038 = vst [vmem:[%s246 + $0xc] sm:$0xf] %v974
          %1039 = vst [vmem:[%s246 + $0x10] sm:$0xf] %v975
          %1040 = vst [vmem:[%s246 + $0x14] sm:$0xf] %v976
          %1041 = vst [vmem:[%s246 + $0x18] sm:$0xf] %v977
          %1042 = vst [vmem:[%s246 + $0x1c] sm:$0xf] %v978
          %1043 = vst [vmem:[%s246 + $0x20] sm:$0xf] %v979
          %1044 = vst [vmem:[%s246 + $0x24] sm:$0xf] %v980
          %1045 = vst [vmem:[%s246 + $0x28] sm:$0xf] %v981
          %1046 = vst [vmem:[%s246 + $0x2c] sm:$0xf] %v982
          %1047 = vst [vmem:[%s246 + $0x30] sm:$0xf] %v983
          %1048 = vst [vmem:[%s246 + $0x34] sm:$0xf] %v984
          %1049 = vst [vmem:[%s246 + $0x38] sm:$0xf] %v985
          %1050 = vst [vmem:[%s246 + $0x3c] sm:$0xf] %v986
          %1051 = vst [vmem:[%s246 + $0x40] sm:$0xf] %v987
          %1052 = vst [vmem:[%s246 + $0x44] sm:$0xf] %v988
          %1053 = vst [vmem:[%s246 + $0x48] sm:$0xf] %v989
          %1054 = vst [vmem:[%s246 + $0x4c] sm:$0xf] %v990
          %1055 = vst [vmem:[%s246 + $0x50] sm:$0xf] %v991
          %1056 = vst [vmem:[%s246 + $0x54] sm:$0xf] %v992
          %1057 = vst [vmem:[%s246 + $0x58] sm:$0xf] %v993
          %1058 = vst [vmem:[%s246 + $0x5c] sm:$0xf] %v994
          %1059 = vst [vmem:[%s246 + $0x60] sm:$0xf] %v995
          %1060 = vst [vmem:[%s246 + $0x64] sm:$0xf] %v996
          %1061 = vst [vmem:[%s246 + $0x68] sm:$0xf] %v997
          %1062 = vst [vmem:[%s246 + $0x6c] sm:$0xf] %v998
          %1063 = vst [vmem:[%s246 + $0x70] sm:$0xf] %v999
          %1064 = vst [vmem:[%s246 + $0x74] sm:$0xf] %v1000
          %1065 = vst [vmem:[%s246 + $0x78] sm:$0xf] %v1001
          %1066 = vst [vmem:[%s246 + $0x7c] sm:$0xf] %v1002
          %v1067 = vadd.f32 %v875, %v876
          %v1068 = vadd.f32 %v1067, %v877
          %v1069 = vadd.f32 %v1068, %v878
          %v1070 = vadd.f32 %v1069, %v879
          %v1071 = vadd.f32 %v1070, %v880
          %v1072 = vadd.f32 %v1071, %v881
          %v1073 = vadd.f32 %v1072, %v882
          %v1074 = vadd.f32 %v1073, %v883
          %v1075 = vadd.f32 %v1074, %v884
          %v1076 = vadd.f32 %v1075, %v885
          %v1077 = vadd.f32 %v1076, %v886
          %v1078 = vadd.f32 %v1077, %v887
          %v1079 = vadd.f32 %v1078, %v888
          %v1080 = vadd.f32 %v1079, %v889
          %v1081 = vadd.f32 %v1080, %v890
          %v1082 = vadd.f32 %v1081, %v891
          %v1083 = vadd.f32 %v1082, %v892
          %v1084 = vadd.f32 %v1083, %v893
          %v1085 = vadd.f32 %v1084, %v894
          %v1086 = vadd.f32 %v1085, %v895
          %v1087 = vadd.f32 %v1086, %v896
          %v1088 = vadd.f32 %v1087, %v897
          %v1089 = vadd.f32 %v1088, %v898
          %v1090 = vadd.f32 %v1089, %v899
          %v1091 = vadd.f32 %v1090, %v900
          %v1092 = vadd.f32 %v1091, %v901
          %v1093 = vadd.f32 %v1092, %v902
          %v1094 = vadd.f32 %v1093, %v903
          %v1095 = vadd.f32 %v1094, %v904
          %v1096 = vadd.f32 %v1095, %v905
          %v1097 = vadd.f32 %v1096, %v906
          %v1098 = vrot.slane %v1097, 4
          %v1099 = vadd.f32 %v1097, %v1098
          %v1100 = vrot.slane %v1099, 2
          %v1101 = vadd.f32 %v1099, %v1100
          %v1102 = vrot.slane %v1101, 1
          %v1103 = vadd.f32 %v1101, %v1102
          %v1104 = vmul.f32 %v875, %v875
          %v1105 = vmul.f32 %v876, %v876
          %v1106 = vmul.f32 %v877, %v877
          %v1107 = vmul.f32 %v878, %v878
          %v1108 = vmul.f32 %v879, %v879
          %v1109 = vmul.f32 %v880, %v880
          %v1110 = vmul.f32 %v881, %v881
          %v1111 = vmul.f32 %v882, %v882
          %v1112 = vmul.f32 %v883, %v883
          %v1113 = vmul.f32 %v884, %v884
          %v1114 = vmul.f32 %v885, %v885
          %v1115 = vmul.f32 %v886, %v886
          %v1116 = vmul.f32 %v887, %v887
          %v1117 = vmul.f32 %v888, %v888
          %v1118 = vmul.f32 %v889, %v889
          %v1119 = vmul.f32 %v890, %v890
          %v1120 = vmul.f32 %v891, %v891
          %v1121 = vmul.f32 %v892, %v892
          %v1122 = vmul.f32 %v893, %v893
          %v1123 = vmul.f32 %v894, %v894
          %v1124 = vmul.f32 %v895, %v895
          %v1125 = vmul.f32 %v896, %v896
          %v1126 = vmul.f32 %v897, %v897
          %v1127 = vmul.f32 %v898, %v898
          %v1128 = vmul.f32 %v899, %v899
          %v1129 = vmul.f32 %v900, %v900
          %v1130 = vmul.f32 %v901, %v901
          %v1131 = vmul.f32 %v902, %v902
          %v1132 = vmul.f32 %v903, %v903
          %v1133 = vmul.f32 %v904, %v904
          %v1134 = vmul.f32 %v905, %v905
          %v1135 = vmul.f32 %v906, %v906
          %v1136 = vadd.f32 %v1104, %v1105
          %v1137 = vadd.f32 %v1136, %v1106
          %v1138 = vadd.f32 %v1137, %v1107
          %v1139 = vadd.f32 %v1138, %v1108
          %v1140 = vadd.f32 %v1139, %v1109
          %v1141 = vadd.f32 %v1140, %v1110
          %v1142 = vadd.f32 %v1141, %v1111
          %v1143 = vadd.f32 %v1142, %v1112
          %v1144 = vadd.f32 %v1143, %v1113
          %v1145 = vadd.f32 %v1144, %v1114
          %v1146 = vadd.f32 %v1145, %v1115
          %v1147 = vadd.f32 %v1146, %v1116
          %v1148 = vadd.f32 %v1147, %v1117
          %v1149 = vadd.f32 %v1148, %v1118
          %v1150 = vadd.f32 %v1149, %v1119
          %v1151 = vadd.f32 %v1150, %v1120
          %v1152 = vadd.f32 %v1151, %v1121
          %v1153 = vadd.f32 %v1152, %v1122
          %v1154 = vadd.f32 %v1153, %v1123
          %v1155 = vadd.f32 %v1154, %v1124
          %v1156 = vadd.f32 %v1155, %v1125
          %v1157 = vadd.f32 %v1156, %v1126
          %v1158 = vadd.f32 %v1157, %v1127
          %v1159 = vadd.f32 %v1158, %v1128
          %v1160 = vadd.f32 %v1159, %v1129
          %v1161 = vadd.f32 %v1160, %v1130
          %v1162 = vadd.f32 %v1161, %v1131
          %v1163 = vadd.f32 %v1162, %v1132
          %v1164 = vadd.f32 %v1163, %v1133
          %v1165 = vadd.f32 %v1164, %v1134
          %v1166 = vadd.f32 %v1165, %v1135
          %v1167 = vrot.slane %v1166, 4
          %v1168 = vadd.f32 %v1166, %v1167
          %v1169 = vrot.slane %v1168, 2
          %v1170 = vadd.f32 %v1168, %v1169
          %v1171 = vrot.slane %v1170, 1
          %v1172 = vadd.f32 %v1170, %v1171
          %v1173 = vlaneseq
          %v1174 = vshrl.u32 %v1173, 7
          %vm1175 = vcmp.eq.s32.totalorder %v1174, 0
          %vm1176 = vcmp.eq.s32.totalorder %v1174, 1
          %v1177 = vsel %vm1176, %v1172, 0.0
          %v1178 = vsel %vm1175, %v1103, %v1177
          %1179 = vst [vmem:[%s253] sm:$0xff] %v1178
        $region44: #{tpu_custom_call.1} parent=27 // pred_fallthru
          _
        %s1180 = sand.u32 %s110, 1
        %s1181 = scalar_lea.sflag [#allocation5], %s1180
        %s1182 = sand.u32 %s110, 1
        %s1183 = smul.addr %s1182, 128
        %s1184 = scalar_lea.vmem [#allocation8], %s1183
        %s1185 = sand.u32 %s138, 1
        %s1186 = scalar_lea.sflag [#allocation10], %s1185
        %s1187 = sand.u32 %s138, 1
        %s1188 = smul.addr %s1187, 8
        %s1189 = scalar_lea.vmem [#allocation9], %s1188
        // Predicated region
        $region45: #{tpu_custom_call.1} parent=27 // pred_check
          %p1190 = pneg %p120
        $region46: #{tpu_custom_call.1} parent=27 // pred_check_branch
          %1192 = sbr.rel (%p1190) target = $region48
        $region47: #{tpu_custom_call.1} parent=27 // pred_region
          %s1193 = smul.u32 32, %s30
          %s1195 = ssub.s32 2048, 2048
          %1196 = vsyncadd %s1181, %s1195
          %s1197 = sadd.s32 %s31, %s1193
          %s1198 = smul.addr %s1197, 64
          %s1199 = scalar_lea.hbm %s2, %s1198
          %s1200 = sshll.u32 %s1184, 4
          %s1201 = int_to_ptr.vmem [resolvable:$true] %s1200
          %1206 = dma.vmem_to_hbm [thread:$0]  %s1201, 2048, %s1199, %s1181, 64, 64, 4
        $region48: #{tpu_custom_call.1} parent=27 // pred_fallthru
          _
        // Predicated region
        $region49: #{tpu_custom_call.1} parent=27 // pred_check
          %p1207 = pneg %p148
        $region50: #{tpu_custom_call.1} parent=27 // pred_check_branch
          %1209 = sbr.rel (%p1207) target = $region52
        $region51: #{tpu_custom_call.1} parent=27 // pred_region
          %s1211 = ssub.s32 128, 128
          %1212 = vsyncadd %s1186, %s1211
          %s1213 = sadd.s32 %s31, %s30
          %s1214 = smul.addr %s1213, 128
          %s1215 = scalar_lea.hbm %s3, %s1214
          %s1217 = sshll.u32 %s1189, 4
          %s1218 = int_to_ptr.vmem [resolvable:$true] %s1217
          %1220 = dma.vmem_to_hbm [thread:$0]  %s1218, 128, %s1215, %s1186
        $region52: #{tpu_custom_call.1} parent=27 // pred_fallthru
          _
      $region28: #{tpu_custom_call.1} parent=5 // pred_fallthru
        _
      %p1221 = scmp.le.s32.totalorder 2, %s20
      // Predicated region
      $region53: #{tpu_custom_call.1} parent=5 // pred_check
        %p1222 = pneg %p1221
      $region54: #{tpu_custom_call.1} parent=5 // pred_check_branch
        %1224 = sbr.rel (%p1222) target = $region56
      $region55: #{tpu_custom_call.1} parent=5 // pred_region
        %s1225 = ssub.s32 %s20, 2
        // Predicated region
        $region57: #{tpu_custom_call.1} parent=55 // pred_check
          %p1226 = pneg %p126
        $region58: #{tpu_custom_call.1} parent=55 // pred_check_branch
          %1228 = sbr.rel (%p1226) target = $region60
        $region59: #{tpu_custom_call.1} parent=55 // pred_region
          %s1229 = sand.u32 %s111, 1
          %s1230 = scalar_lea.sflag [#allocation5], %s1229
          %s1231 = sand.u32 %s111, 1
          %s1232 = smul.addr %s1231, 128
          %s1233 = scalar_lea.vmem [#allocation8], %s1232
          %1234 = dma.done %s1230, 2048
        $region60: #{tpu_custom_call.1} parent=55 // pred_fallthru
          _
        // Predicated region
        $region61: #{tpu_custom_call.1} parent=55 // pred_check
          %p1235 = pneg %p154
        $region62: #{tpu_custom_call.1} parent=55 // pred_check_branch
          %1237 = sbr.rel (%p1235) target = $region64
        $region63: #{tpu_custom_call.1} parent=55 // pred_region
          %s1238 = sand.u32 %s139, 1
          %s1239 = scalar_lea.sflag [#allocation10], %s1238
          %s1240 = sand.u32 %s139, 1
          %s1241 = smul.addr %s1240, 8
          %s1242 = scalar_lea.vmem [#allocation9], %s1241
          %1243 = dma.done %s1239, 128
        $region64: #{tpu_custom_call.1} parent=55 // pred_fallthru
          _
      $region56: #{tpu_custom_call.1} parent=5 // pred_fallthru
        _
    $region6: #{tpu_custom_call.1} parent=1 // loop_footer
      %s24 = sadd.s32 1, %s20
    $region7: #{tpu_custom_call.1} parent=1 // loop_footer_branch
      %19 = sbr.rel target = $region3
    $region8: #{tpu_custom_call.1} parent=1 // loop_exit
      _
    %1244 = vsyncpa [#allocation4], 1
    %s1245 = scalar_lea.sflag [#allocation4], 1
    %1246 = vsyncpa %s1245, 1
    %1247 = vsyncpa [#allocation7], 1
    %1248 = vsyncpa [#allocation5], 1
    %s1249 = scalar_lea.sflag [#allocation5], 1
    %1250 = vsyncpa %s1249, 1
    %1251 = vsyncpa [#allocation10], 1
    %s1252 = scalar_lea.sflag [#allocation10], 1
    %1253 = vsyncpa %s1252, 1

</llo_original>
